<compile_context>
chip_gen: v5e
topology: v5e:2x2
jax: 0.10.0
libtpu: 0.0.40
codegen_flags: <defaults>
</compile_context>

<pallas_src>
from functools import partial

import jax
import jax.numpy as jnp
from jax.experimental import pallas as pl
from jax.experimental.pallas import tpu as pltpu

LANE = 128  # TPU lane width; out_channels / mid_channels are zero-padded to this.

# conservative soft VMEM budget (fits v7x's 64 MiB physical with headroom,
# well under v5e/v6e's 128 MiB)
_VMEM_SOFT_BUDGET = 48 << 20
_VMEM_LIMIT_CAP = 64 << 20


def _rnd(v, m):
    return (v + m - 1) // m * m


# ----------------------------- in-kernel math helpers -----------------------------

def _erf(x):
    # Abramowitz & Stegun 7.1.26 (max abs err ~1.5e-7).  Only exp/mul/add/select,
    # so it always lowers on Mosaic.
    p = 0.3275911
    a1, a2, a3, a4, a5 = 0.254829592, -0.284496736, 1.421413741, -1.453152027, 1.061405429
    ax = jnp.abs(x)
    t = 1.0 / (1.0 + p * ax)
    poly = ((((a5 * t + a4) * t + a3) * t + a2) * t + a1) * t
    y = 1.0 - poly * jnp.exp(-ax * ax)
    return jnp.where(x >= 0.0, y, -y)


def _gelu_exact(x):
    # torch.nn.GELU() default (erf form): 0.5 * x * (1 + erf(x / sqrt(2)))
    return 0.5 * x * (1.0 + _erf(x * 0.7071067811865476))


# ----------------------------------- Pallas kernel ---------------------------------

def _schnet_kernel(x_ref, ef_ref, src_ref, dst_ref, w_ref, b_ref, out_ref,
                   h_scr, hb_scr, acc_scr, *, offs, cin_rows, ef_rows):
    f32, bf16 = jnp.float32, jnp.bfloat16
    o_w1, o_waef, o_wah, o_wb, o_wc, o_w2, o_w3 = offs
    n_nodes = x_ref.shape[0]          # padded to a multiple of 8
    te = ef_ref.shape[0]
    lane = out_ref.shape[1]           # 128

    def mm(act, row_off, n_rows):
        # activations (cast bf16; no-op for bf16 inputs) x bf16 weight-slab rows,
        # f32 accumulation on the MXU.
        return jax.lax.dot_general(
            act.astype(bf16), w_ref[row_off:row_off + n_rows, :],
            (((1,), (0,)), ((), ())), preferred_element_type=f32)

    e = pl.program_id(0)

    # ---- first grid step: atomwise1 into resident scratch (f32 + bf16 copy); ----
    # ---- zero the scatter-add aggregator                                      ----
    @pl.when(e == 0)
    def _init():
        h = mm(x_ref[...], o_w1, cin_rows) + b_ref[0:1, :]        # [N, Cp] f32
        h_scr[...] = h
        hb_scr[...] = h.astype(bf16)                              # cached once, reused every tile
        acc_scr[...] = jnp.zeros_like(acc_scr)

    # ---- every step: gather x_j, message MLP, scatter-add for this edge tile ----
    node_l = jax.lax.broadcasted_iota(jnp.int32, (te, n_nodes), 1)   # node ids along lanes
    node_s = jax.lax.broadcasted_iota(jnp.int32, (n_nodes, te), 0)   # node ids along sublanes
    g_src = (node_l == src_ref[...]).astype(bf16)     # [TE, N]  one-hot gather (exact in bf16)
    g_dst_t = (node_s == dst_ref[...]).astype(bf16)   # [N, TE]  one-hot scatter (pre-transposed)

    h_j = jax.lax.dot_general(g_src, hb_scr[...], (((1,), (0,)), ((), ())),
                              preferred_element_type=f32)             # [TE, Cp]

    # message MLP; layer 1 is 2 matmuls: packed bf16 [sin|cos|edge_attr] slab + gathered x_j
    m = mm(ef_ref[...], o_waef, ef_rows) + mm(h_j, o_wah, lane) + b_ref[1:2, :]
    m = _gelu_exact(m)
    m = _gelu_exact(mm(m, o_wb, lane) + b_ref[2:3, :])
    # nn.Dropout(0.1): identity in eval/inference mode.
    msg = mm(m, o_wc, lane) + b_ref[3:4, :]                            # [TE, Cp]

    # aggr='add': scatter-add into the resident accumulator (contraction over the edge axis)
    acc_scr[...] += jax.lax.dot_general(g_dst_t, msg.astype(bf16),
                                        (((1,), (0,)), ((), ())),
                                        preferred_element_type=f32)    # [N, Cp]

    # ---- last grid step: residual + atomwise2/ReLU + atomwise3, lane-dense store ----
    @pl.when(e == pl.num_programs(0) - 1)
    def _fin():
        y = h_scr[...] + acc_scr[...]
        y = jnp.maximum(mm(y, o_w2, lane) + b_ref[4:5, :], 0.0)
        out_ref[...] = mm(y, o_w3, lane) + b_ref[5:6, :]


# ------------------------------------ wrapper --------------------------------------

def _pack_params(params, c_in, c_out, mid, num_filters):
    assert c_out <= LANE and mid <= LANE, "packed-slab layout assumes out/mid <= 128"
    c_in_p = _rnd(c_in, 16)                       # 16-aligned rows (bf16 sublane packing)
    ef_p = _rnd(2 * num_filters + c_out, 16)

    def padw(w, rows):
        return jnp.zeros((rows, LANE), jnp.float32).at[:w.shape[0], :w.shape[1]].set(w)

    f2 = 2 * num_filters
    wa = params["wa"]
    wa_ef = wa[:f2 + c_out]        # rows for [sin, cos, edge_attr]
    wa_h = wa[f2 + c_out:]         # rows for gathered x_j

    blocks = [padw(params["w1"], c_in_p), padw(wa_ef, ef_p), padw(wa_h, LANE),
              padw(params["wb"], LANE), padw(params["wc"], LANE),
              padw(params["w2"], LANE), padw(params["w3"], LANE)]
    offs, o = [], 0
    for blk in blocks:
        offs.append(o)
        o += blk.shape[0]
    wslab = jnp.concatenate(blocks, axis=0).astype(jnp.bfloat16)       # one bf16 weight slab

    def padb(b):
        return jnp.zeros((1, LANE), jnp.float32).at[:, :b.shape[1]].set(b)

    bslab = jnp.concatenate([padb(params["b1"]), padb(params["ba"]), padb(params["bb"]),
                             padb(params["bc"]), padb(params["b2"]), padb(params["b3"]),
                             jnp.zeros((2, LANE), jnp.float32)], axis=0)  # [8, 128] f32
    return wslab, bslab, tuple(offs), c_in_p, ef_p


def _vmem_budget_te(te, n_p, ef_p, resident_bytes):
    """Shrink the edge tile until streamed tiles + one-hot/MLP temporaries fit the budget."""
    budget = max(_VMEM_SOFT_BUDGET - resident_bytes, 4 << 20)
    while te > 128:
        per_step = (2 * te * ef_p * 2          # double-buffered bf16 ef tile
                    + 2 * 2 * te * 4           # double-buffered src/dst int32 tiles
                    + 2 * te * n_p * 2         # g_src + g_dst_t bf16 one-hots
                    + 6 * te * LANE * 4)       # h_j / m / msg f32 temporaries (rough)
        if per_step <= budget:
            break
        te //= 2
    return max(te, 128)


@partial(jax.jit, static_argnames=("edge_block",))
def schnet_interaction(x, edge_index, edge_attr, x_pos, params, *, edge_block=1024):
    n_nodes, c_in = x.shape
    n_edges = edge_index.shape[1]
    c_out = params["w1"].shape[1]
    mid = params["wb"].shape[0]
    num_filters = params["omeg"].shape[1]

    wslab, bslab, offs, c_in_p, ef_p = _pack_params(params, c_in, c_out, mid, num_filters)

    # pad node count to a multiple of 8 (f32 sublane) -> no masked sublane layouts on the
    # resident [N,128] buffers / node-side matmuls.
    n_p = _rnd(n_nodes, 8)

    # resident VMEM: x, weight/bias slabs, h_scr(f32) + hb_scr(bf16) + acc_scr(f32) + out(f32)
    resident_bytes = (n_p * c_in_p * 4 + wslab.size * 2 + bslab.size * 4
                      + n_p * LANE * (4 + 2 + 4 + 4))

    # edge tile (multiple of 128 for the lane-dense dst-index row), clamped to the VMEM budget
    te = int(min(_rnd(max(edge_block, 128), 128), _rnd(n_edges, 128)))
    te = _vmem_budget_te(te, n_p, ef_p, resident_bytes)
    ep = _rnd(n_edges, te)
    n_eb = ep // te

    src = edge_index[0].astype(jnp.int32)
    dst = edge_index[1].astype(jnp.int32)

    # --- glue: radial sin/cos featurization, packed with edge_attr into one bf16 slab ---
    d = jnp.take(x_pos, dst, axis=0) - jnp.take(x_pos, src, axis=0)
    r = jnp.sqrt(jnp.sum(d * d, axis=-1, keepdims=True))                # p=2 norm, [E, 1]
    rbf = r * params["omeg"]                                            # [E, F]
    ef = jnp.concatenate([jnp.sin(rbf), jnp.cos(rbf), edge_attr], axis=-1)
    ef = ef.astype(jnp.bfloat16)                                        # streamed in bf16
    ef = jnp.pad(ef, ((0, ep - n_edges), (0, ef_p - ef.shape[1])))      # [Ep, EFp]

    # padded edges get index -1 -> all-zero one-hot row/col -> dropped automatically
    src_col = jnp.pad(src, (0, ep - n_edges), constant_values=-1).reshape(ep, 1)
    dst_row = jnp.pad(dst, (0, ep - n_edges), constant_values=-1).reshape(1, ep)

    xp = jnp.pad(x.astype(jnp.float32), ((0, n_p - n_nodes), (0, c_in_p - c_in)))  # [Np, Cin_p]

    kernel = partial(_schnet_kernel, offs=offs, cin_rows=c_in_p, ef_rows=ef_p)

    # TODO(synk): on v7x the single "arbitrary" edge axis serializes on one of the two
    # TensorCores; a leading "parallel" axis over edge halves with per-core partial
    # accumulators + a tiny finalize step would use both.
    grid_spec = pltpu.PrefetchScalarGridSpec(
        num_scalar_prefetch=0,
        grid=(n_eb,),
        in_specs=[
            pl.BlockSpec((n_p, c_in_p), lambda e: (0, 0)),       # x (resident)
            pl.BlockSpec((te, ef_p), lambda e: (e, 0)),          # bf16 [sin|cos|edge_attr] tile
            pl.BlockSpec((te, 1), lambda e: (e, 0)),             # src indices (column)
            pl.BlockSpec((1, te), lambda e: (0, e)),             # dst indices (lane-dense row)
            pl.BlockSpec(wslab.shape, lambda e: (0, 0)),         # packed bf16 weight slab
            pl.BlockSpec(bslab.shape, lambda e: (0, 0)),         # packed f32 bias slab
        ],
        out_specs=pl.BlockSpec((n_p, LANE), lambda e: (0, 0)),
        scratch_shapes=[pltpu.VMEM((n_p, LANE), jnp.float32),    # h = atomwise1(x), f32
                        pltpu.VMEM((n_p, LANE), jnp.bfloat16),   # bf16 copy of h (gather operand)
                        pltpu.VMEM((n_p, LANE), jnp.float32)],   # scatter-add accumulator
    )

    flops = int(2 * (n_p * c_in_p * LANE                 # atomwise1
                     + 2 * ep * n_p * LANE               # one-hot gather + scatter
                     + ep * (ef_p + LANE) * LANE         # message MLP layer 1
                     + 2 * ep * LANE * LANE              # message MLP layers 2, 3
                     + 2 * n_p * LANE * LANE))           # atomwise2, atomwise3
    bytes_acc = int(xp.size * 4 + ef.size * 2 + (src_col.size + dst_row.size) * 4
                    + wslab.size * 2 + bslab.size * 4 + n_p * LANE * 4)

    per_step_bytes = (2 * te * ef_p * 2 + 2 * 2 * te * 4
                      + 2 * te * n_p * 2 + 6 * te * LANE * 4)
    vmem_limit = int(min(max((resident_bytes + per_step_bytes) * 2, 32 << 20), _VMEM_LIMIT_CAP))

    out = pl.pallas_call(
        kernel,
        grid_spec=grid_spec,
        out_shape=jax.ShapeDtypeStruct((n_p, LANE), jnp.float32),
        compiler_params=pltpu.CompilerParams(dimension_semantics=("arbitrary",),
                                             vmem_limit_bytes=vmem_limit),
        cost_estimate=pl.CostEstimate(flops=flops, transcendentals=int(2 * ep * LANE),
                                      bytes_accessed=bytes_acc),
    )(xp, ef, src_col, dst_row, wslab, bslab)
    return out[:n_nodes, :c_out]


# ------------------------------- params & reference --------------------------------

def init_params(key, c_in, c_out, mid=64, num_filters=16):
    keys = jax.random.split(key, 6)

    def lin(k, fan_in, fan_out):
        kw, kb = jax.random.split(k)
        w = jax.random.normal(kw, (fan_in, fan_out), jnp.float32) / jnp.sqrt(float(fan_in))
        b = 0.01 * jax.random.normal(kb, (1, fan_out), jnp.float32)
        return w, b

    w1, b1 = lin(keys[0], c_in, c_out)                                  # atomwise1
    wa, ba = lin(keys[1], 2 * num_filters + 2 * c_out, mid)             # cfconv.nn[0]
    wb, bb = lin(keys[2], mid, mid)                                     # cfconv.nn[2]
    wc, bc = lin(keys[3], mid, c_out)                                   # cfconv.nn[5]
    w2, b2 = lin(keys[4], c_out, c_out)                                 # atomwise2
    w3, b3 = lin(keys[5], c_out, c_out)                                 # atomwise3
    omeg = jnp.array([10.0 * c_out ** (1.0 - 2.0 * i / num_filters) for i in range(num_filters)],
                     jnp.float32).reshape(1, num_filters)
    return dict(w1=w1, b1=b1, wa=wa, ba=ba, wb=wb, bb=bb, wc=wc, bc=bc,
                w2=w2, b2=b2, w3=w3, b3=b3, omeg=omeg)


def reference(x, edge_index, edge_attr, x_pos, params):
    # pure-JAX f32 reference mirroring the PyTorch forward (eval mode)
    h = x @ params["w1"] + params["b1"]
    x_cat = jnp.concatenate([h, x_pos], axis=-1)
    src, dst = edge_index[0], edge_index[1]
    x_j, x_i = x_cat[src], x_cat[dst]
    r = jnp.linalg.norm(x_i[:, -3:] - x_j[:, -3:], axis=-1, keepdims=True)
    feat = r * params["omeg"]
    feat = jnp.concatenate([jnp.sin(feat), jnp.cos(feat), edge_attr, x_j[:, :-3]], axis=-1)
    m = jax.nn.gelu(feat @ params["wa"] + params["ba"], approximate=False)
    m = jax.nn.gelu(m @ params["wb"] + params["bb"], approximate=False)
    msg = m @ params["wc"] + params["bc"]
    agg = jnp.zeros_like(h).at[dst].add(msg)
    y = h + agg
    y = jax.nn.relu(y @ params["w2"] + params["b2"])
    return y @ params["w3"] + params["b3"]


# ------------------------------------- main -----------------------------------------

if __name__ == "__main__":
    key = jax.random.PRNGKey(0)
    k_x, k_pos, k_ea, k_ei, k_p = jax.random.split(key, 5)

    N, E = 64, 300
    C_IN, C_OUT, MID, NUM_FILTERS = 8, 8, 64, 16

    x = jax.random.normal(k_x, (N, C_IN), jnp.float32)
    x_pos = jax.random.normal(k_pos, (N, 3), jnp.float32)
    edge_attr = jax.random.normal(k_ea, (E, C_OUT), jnp.float32)
    edge_index = jax.random.randint(k_ei, (2, E), 0, N, jnp.int32)

    params = init_params(k_p, C_IN, C_OUT, MID, NUM_FILTERS)

    # edge_block=128 -> 3 edge tiles, exercises init / accumulate / finalize phases
    out = schnet_interaction(x, edge_index, edge_attr, x_pos, params, edge_block=128)
    out = jax.block_until_ready(out)

    ref = reference(x, edge_index, edge_attr, x_pos, params)
    assert out.shape == (N, C_OUT)
    err = float(jnp.max(jnp.abs(out - ref)))
    # bf16 MXU operands (weights + activations, f32 accumulation) -> relaxed tolerance vs f32 ref
    assert jnp.allclose(out, ref, atol=5e-2, rtol=5e-2), err

    # also run with the default (large) edge tile to exercise the VMEM-budget path
    out2 = jax.block_until_ready(schnet_interaction(x, edge_index, edge_attr, x_pos, params))
    assert jnp.allclose(out2, ref, atol=5e-2, rtol=5e-2)

    print("KERNEL_OK")
</pallas_src>

<mosaic_0001>
module attributes {stable_mosaic.version = 11 : i64} {
  func.func @_schnet_kernel(%arg0: i32, %arg1: memref<64x16xf32, #tpu.memory_space<vmem>>, %arg2: memref<128x48xbf16, #tpu.memory_space<vmem>>, %arg3: memref<128x1xi32, #tpu.memory_space<vmem>>, %arg4: memref<1x128xi32, #tpu.memory_space<vmem>>, %arg5: memref<704x128xbf16, #tpu.memory_space<vmem>>, %arg6: memref<8x128xf32, #tpu.memory_space<vmem>>, %arg7: memref<64x128xf32, #tpu.memory_space<vmem>>, %arg8: memref<64x128xf32, #tpu.memory_space<vmem>>, %arg9: memref<64x128xbf16, #tpu.memory_space<vmem>>, %arg10: memref<64x128xf32, #tpu.memory_space<vmem>>) attributes {dimension_semantics = [#tpu.dimension_semantics<arbitrary>], iteration_bounds = array<i64: 3>, scalar_prefetch = 0 : i64, scratch_operands = 3 : i64, tpu.core_type = #tpu.core_type<tc>, window_params = [{pipeline_mode = #tpu.pipeline_mode<synchronous>, transform_indices = @transform_0, window_bounds = array<i64: 64, 16>}, {transform_indices = @transform_1, window_bounds = array<i64: 128, 48>}, {transform_indices = @transform_2, window_bounds = array<i64: 128, 1>}, {transform_indices = @transform_3, window_bounds = array<i64: 1, 128>}, {pipeline_mode = #tpu.pipeline_mode<synchronous>, transform_indices = @transform_4, window_bounds = array<i64: 704, 128>}, {pipeline_mode = #tpu.pipeline_mode<synchronous>, transform_indices = @transform_5, window_bounds = array<i64: 8, 128>}, {pipeline_mode = #tpu.pipeline_mode<synchronous>, transform_indices = @transform_6, window_bounds = array<i64: 64, 128>}]} {
    %c0_i32 = arith.constant 0 : i32
    %0 = arith.cmpi eq, %arg0, %c0_i32 : i32
    %1 = arith.extui %0 : i1 to i32
    %c0_i32_0 = arith.constant 0 : i32
    %2 = arith.cmpi ne, %1, %c0_i32_0 : i32
    scf.if %2 {
      %c0_55 = arith.constant 0 : index
      %c0_56 = arith.constant 0 : index
      %129 = vector.load %arg1[%c0_55, %c0_56] : memref<64x16xf32, #tpu.memory_space<vmem>>, vector<64x16xf32>
      %130 = arith.truncf %129 : vector<64x16xf32> to vector<64x16xbf16>
      %c0_57 = arith.constant 0 : index
      %c0_58 = arith.constant 0 : index
      %131 = vector.load %arg5[%c0_57, %c0_58] : memref<704x128xbf16, #tpu.memory_space<vmem>>, vector<16x128xbf16>
      %cst_59 = arith.constant dense<0.000000e+00> : vector<64x128xf32>
      %132 = tpu.matmul %130, %131, %cst_59 {dimension_numbers = #tpu.dot_dimension_numbers<[1], [0], [0], [1], [0, 0, 1, 1], [], []>} : vector<64x16xbf16>, vector<16x128xbf16>, vector<64x128xf32> -> vector<64x128xf32>
      %c0_60 = arith.constant 0 : index
      %c0_61 = arith.constant 0 : index
      %133 = vector.load %arg6[%c0_60, %c0_61] : memref<8x128xf32, #tpu.memory_space<vmem>>, vector<1x128xf32>
      %134 = vector.broadcast %133 : vector<1x128xf32> to vector<64x128xf32>
      %135 = arith.addf %132, %134 : vector<64x128xf32>
      %c0_62 = arith.constant 0 : index
      %c0_63 = arith.constant 0 : index
      %136 = vector.load %arg8[%c0_62, %c0_63] : memref<64x128xf32, #tpu.memory_space<vmem>>, vector<64x128xf32>
      tpu.vector_store %arg8[%c0_62, %c0_63], %135 {strides = array<i32>} : memref<64x128xf32, #tpu.memory_space<vmem>>, vector<64x128xf32>,
      %137 = arith.truncf %135 : vector<64x128xf32> to vector<64x128xbf16>
      %c0_64 = arith.constant 0 : index
      %c0_65 = arith.constant 0 : index
      %138 = vector.load %arg9[%c0_64, %c0_65] : memref<64x128xbf16, #tpu.memory_space<vmem>>, vector<64x128xbf16>
      tpu.vector_store %arg9[%c0_64, %c0_65], %137 {strides = array<i32>} : memref<64x128xbf16, #tpu.memory_space<vmem>>, vector<64x128xbf16>,
      %cst_66 = arith.constant 0.000000e+00 : f32
      %139 = vector.broadcast %cst_66 : f32 to vector<64x128xf32>
      %c0_67 = arith.constant 0 : index
      %c0_68 = arith.constant 0 : index
      %140 = vector.load %arg10[%c0_67, %c0_68] : memref<64x128xf32, #tpu.memory_space<vmem>>, vector<64x128xf32>
      tpu.vector_store %arg10[%c0_67, %c0_68], %139 {strides = array<i32>} : memref<64x128xf32, #tpu.memory_space<vmem>>, vector<64x128xf32>,
    } else {
    }
    %3 = tpu.iota {dimensions = array<i32: 1>} : vector<128x64xi32>
    %4 = tpu.iota {dimensions = array<i32: 0>} : vector<64x128xi32>
    %c0 = arith.constant 0 : index
    %c0_1 = arith.constant 0 : index
    %5 = vector.load %arg3[%c0, %c0_1] : memref<128x1xi32, #tpu.memory_space<vmem>>, vector<128x1xi32>
    %6 = vector.broadcast %5 : vector<128x1xi32> to vector<128x64xi32>
    %7 = arith.cmpi eq, %3, %6 : vector<128x64xi32>
    %8 = arith.extui %7 : vector<128x64xi1> to vector<128x64xi32>
    %9 = arith.sitofp %8 : vector<128x64xi32> to vector<128x64xf32>
    %10 = arith.truncf %9 : vector<128x64xf32> to vector<128x64xbf16>
    %c0_2 = arith.constant 0 : index
    %c0_3 = arith.constant 0 : index
    %11 = vector.load %arg4[%c0_2, %c0_3] : memref<1x128xi32, #tpu.memory_space<vmem>>, vector<1x128xi32>
    %12 = vector.broadcast %11 : vector<1x128xi32> to vector<64x128xi32>
    %13 = arith.cmpi eq, %4, %12 : vector<64x128xi32>
    %14 = arith.extui %13 : vector<64x128xi1> to vector<64x128xi32>
    %15 = arith.sitofp %14 : vector<64x128xi32> to vector<64x128xf32>
    %16 = arith.truncf %15 : vector<64x128xf32> to vector<64x128xbf16>
    %c0_4 = arith.constant 0 : index
    %c0_5 = arith.constant 0 : index
    %17 = vector.load %arg9[%c0_4, %c0_5] : memref<64x128xbf16, #tpu.memory_space<vmem>>, vector<64x128xbf16>
    %cst = arith.constant dense<0.000000e+00> : vector<128x128xf32>
    %18 = tpu.matmul %10, %17, %cst {dimension_numbers = #tpu.dot_dimension_numbers<[1], [0], [0], [1], [0, 0, 1, 1], [], []>} : vector<128x64xbf16>, vector<64x128xbf16>, vector<128x128xf32> -> vector<128x128xf32>
    %c0_6 = arith.constant 0 : index
    %c0_7 = arith.constant 0 : index
    %19 = vector.load %arg2[%c0_6, %c0_7] : memref<128x48xbf16, #tpu.memory_space<vmem>>, vector<128x48xbf16>
    %c16 = arith.constant 16 : index
    %c0_8 = arith.constant 0 : index
    %20 = vector.load %arg5[%c16, %c0_8] : memref<704x128xbf16, #tpu.memory_space<vmem>>, vector<48x128xbf16>
    %cst_9 = arith.constant dense<0.000000e+00> : vector<128x128xf32>
    %21 = tpu.matmul %19, %20, %cst_9 {dimension_numbers = #tpu.dot_dimension_numbers<[1], [0], [0], [1], [0, 0, 1, 1], [], []>} : vector<128x48xbf16>, vector<48x128xbf16>, vector<128x128xf32> -> vector<128x128xf32>
    %22 = arith.truncf %18 : vector<128x128xf32> to vector<128x128xbf16>
    %c64 = arith.constant 64 : index
    %c0_10 = arith.constant 0 : index
    %23 = vector.load %arg5[%c64, %c0_10] : memref<704x128xbf16, #tpu.memory_space<vmem>>, vector<128x128xbf16>
    %cst_11 = arith.constant dense<0.000000e+00> : vector<128x128xf32>
    %24 = tpu.matmul %22, %23, %cst_11 {dimension_numbers = #tpu.dot_dimension_numbers<[1], [0], [0], [1], [0, 0, 1, 1], [], []>} : vector<128x128xbf16>, vector<128x128xbf16>, vector<128x128xf32> -> vector<128x128xf32>
    %25 = arith.addf %21, %24 : vector<128x128xf32>
    %c1 = arith.constant 1 : index
    %c0_12 = arith.constant 0 : index
    %26 = vector.load %arg6[%c1, %c0_12] : memref<8x128xf32, #tpu.memory_space<vmem>>, vector<1x128xf32>
    %27 = vector.broadcast %26 : vector<1x128xf32> to vector<128x128xf32>
    %28 = arith.addf %25, %27 : vector<128x128xf32>
    %cst_13 = arith.constant 5.000000e-01 : f32
    %29 = vector.broadcast %cst_13 : f32 to vector<128x128xf32>
    %30 = arith.mulf %29, %28 : vector<128x128xf32>
    %cst_14 = arith.constant 0.707106769 : f32
    %31 = vector.broadcast %cst_14 : f32 to vector<128x128xf32>
    %32 = arith.mulf %28, %31 : vector<128x128xf32>
    %33 = math.absf %32 : vector<128x128xf32>
    %cst_15 = arith.constant 0.327591091 : f32
    %34 = vector.broadcast %cst_15 : f32 to vector<128x128xf32>
    %35 = arith.mulf %34, %33 : vector<128x128xf32>
    %cst_16 = arith.constant 1.000000e+00 : f32
    %36 = vector.broadcast %cst_16 : f32 to vector<128x128xf32>
    %37 = arith.addf %36, %35 : vector<128x128xf32>
    %cst_17 = arith.constant 1.000000e+00 : f32
    %38 = vector.broadcast %cst_17 : f32 to vector<128x128xf32>
    %39 = arith.divf %38, %37 : vector<128x128xf32>
    %cst_18 = arith.constant 1.06140542 : f32
    %40 = vector.broadcast %cst_18 : f32 to vector<128x128xf32>
    %41 = arith.mulf %40, %39 : vector<128x128xf32>
    %cst_19 = arith.constant -1.45315206 : f32
    %42 = vector.broadcast %cst_19 : f32 to vector<128x128xf32>
    %43 = arith.addf %41, %42 : vector<128x128xf32>
    %44 = arith.mulf %43, %39 : vector<128x128xf32>
    %cst_20 = arith.constant 1.42141378 : f32
    %45 = vector.broadcast %cst_20 : f32 to vector<128x128xf32>
    %46 = arith.addf %44, %45 : vector<128x128xf32>
    %47 = arith.mulf %46, %39 : vector<128x128xf32>
    %cst_21 = arith.constant -0.284496725 : f32
    %48 = vector.broadcast %cst_21 : f32 to vector<128x128xf32>
    %49 = arith.addf %47, %48 : vector<128x128xf32>
    %50 = arith.mulf %49, %39 : vector<128x128xf32>
    %cst_22 = arith.constant 0.254829586 : f32
    %51 = vector.broadcast %cst_22 : f32 to vector<128x128xf32>
    %52 = arith.addf %50, %51 : vector<128x128xf32>
    %53 = arith.mulf %52, %39 : vector<128x128xf32>
    %cst_23 = arith.constant 0.000000e+00 : f32
    %54 = vector.broadcast %cst_23 : f32 to vector<128x128xf32>
    %55 = arith.subf %54, %33 : vector<128x128xf32>
    %56 = arith.mulf %55, %33 : vector<128x128xf32>
    %57 = math.exp %56 : vector<128x128xf32>
    %58 = arith.mulf %53, %57 : vector<128x128xf32>
    %cst_24 = arith.constant 1.000000e+00 : f32
    %59 = vector.broadcast %cst_24 : f32 to vector<128x128xf32>
    %60 = arith.subf %59, %58 : vector<128x128xf32>
    %cst_25 = arith.constant 0.000000e+00 : f32
    %61 = vector.broadcast %cst_25 : f32 to vector<128x128xf32>
    %62 = arith.cmpf oge, %32, %61 : vector<128x128xf32>
    %cst_26 = arith.constant 0.000000e+00 : f32
    %63 = vector.broadcast %cst_26 : f32 to vector<128x128xf32>
    %64 = arith.subf %63, %60 : vector<128x128xf32>
    %65 = arith.select %62, %60, %64 : vector<128x128xi1>, vector<128x128xf32>
    %cst_27 = arith.constant 1.000000e+00 : f32
    %66 = vector.broadcast %cst_27 : f32 to vector<128x128xf32>
    %67 = arith.addf %66, %65 : vector<128x128xf32>
    %68 = arith.mulf %30, %67 : vector<128x128xf32>
    %69 = arith.truncf %68 : vector<128x128xf32> to vector<128x128xbf16>
    %c192 = arith.constant 192 : index
    %c0_28 = arith.constant 0 : index
    %70 = vector.load %arg5[%c192, %c0_28] : memref<704x128xbf16, #tpu.memory_space<vmem>>, vector<128x128xbf16>
    %cst_29 = arith.constant dense<0.000000e+00> : vector<128x128xf32>
    %71 = tpu.matmul %69, %70, %cst_29 {dimension_numbers = #tpu.dot_dimension_numbers<[1], [0], [0], [1], [0, 0, 1, 1], [], []>} : vector<128x128xbf16>, vector<128x128xbf16>, vector<128x128xf32> -> vector<128x128xf32>
    %c2 = arith.constant 2 : index
    %c0_30 = arith.constant 0 : index
    %72 = vector.load %arg6[%c2, %c0_30] : memref<8x128xf32, #tpu.memory_space<vmem>>, vector<1x128xf32>
    %73 = vector.broadcast %72 : vector<1x128xf32> to vector<128x128xf32>
    %74 = arith.addf %71, %73 : vector<128x128xf32>
    %cst_31 = arith.constant 5.000000e-01 : f32
    %75 = vector.broadcast %cst_31 : f32 to vector<128x128xf32>
    %76 = arith.mulf %75, %74 : vector<128x128xf32>
    %cst_32 = arith.constant 0.707106769 : f32
    %77 = vector.broadcast %cst_32 : f32 to vector<128x128xf32>
    %78 = arith.mulf %74, %77 : vector<128x128xf32>
    %79 = math.absf %78 : vector<128x128xf32>
    %cst_33 = arith.constant 0.327591091 : f32
    %80 = vector.broadcast %cst_33 : f32 to vector<128x128xf32>
    %81 = arith.mulf %80, %79 : vector<128x128xf32>
    %cst_34 = arith.constant 1.000000e+00 : f32
    %82 = vector.broadcast %cst_34 : f32 to vector<128x128xf32>
    %83 = arith.addf %82, %81 : vector<128x128xf32>
    %cst_35 = arith.constant 1.000000e+00 : f32
    %84 = vector.broadcast %cst_35 : f32 to vector<128x128xf32>
    %85 = arith.divf %84, %83 : vector<128x128xf32>
    %cst_36 = arith.constant 1.06140542 : f32
    %86 = vector.broadcast %cst_36 : f32 to vector<128x128xf32>
    %87 = arith.mulf %86, %85 : vector<128x128xf32>
    %cst_37 = arith.constant -1.45315206 : f32
    %88 = vector.broadcast %cst_37 : f32 to vector<128x128xf32>
    %89 = arith.addf %87, %88 : vector<128x128xf32>
    %90 = arith.mulf %89, %85 : vector<128x128xf32>
    %cst_38 = arith.constant 1.42141378 : f32
    %91 = vector.broadcast %cst_38 : f32 to vector<128x128xf32>
    %92 = arith.addf %90, %91 : vector<128x128xf32>
    %93 = arith.mulf %92, %85 : vector<128x128xf32>
    %cst_39 = arith.constant -0.284496725 : f32
    %94 = vector.broadcast %cst_39 : f32 to vector<128x128xf32>
    %95 = arith.addf %93, %94 : vector<128x128xf32>
    %96 = arith.mulf %95, %85 : vector<128x128xf32>
    %cst_40 = arith.constant 0.254829586 : f32
    %97 = vector.broadcast %cst_40 : f32 to vector<128x128xf32>
    %98 = arith.addf %96, %97 : vector<128x128xf32>
    %99 = arith.mulf %98, %85 : vector<128x128xf32>
    %cst_41 = arith.constant 0.000000e+00 : f32
    %100 = vector.broadcast %cst_41 : f32 to vector<128x128xf32>
    %101 = arith.subf %100, %79 : vector<128x128xf32>
    %102 = arith.mulf %101, %79 : vector<128x128xf32>
    %103 = math.exp %102 : vector<128x128xf32>
    %104 = arith.mulf %99, %103 : vector<128x128xf32>
    %cst_42 = arith.constant 1.000000e+00 : f32
    %105 = vector.broadcast %cst_42 : f32 to vector<128x128xf32>
    %106 = arith.subf %105, %104 : vector<128x128xf32>
    %cst_43 = arith.constant 0.000000e+00 : f32
    %107 = vector.broadcast %cst_43 : f32 to vector<128x128xf32>
    %108 = arith.cmpf oge, %78, %107 : vector<128x128xf32>
    %cst_44 = arith.constant 0.000000e+00 : f32
    %109 = vector.broadcast %cst_44 : f32 to vector<128x128xf32>
    %110 = arith.subf %109, %106 : vector<128x128xf32>
    %111 = arith.select %108, %106, %110 : vector<128x128xi1>, vector<128x128xf32>
    %cst_45 = arith.constant 1.000000e+00 : f32
    %112 = vector.broadcast %cst_45 : f32 to vector<128x128xf32>
    %113 = arith.addf %112, %111 : vector<128x128xf32>
    %114 = arith.mulf %76, %113 : vector<128x128xf32>
    %115 = arith.truncf %114 : vector<128x128xf32> to vector<128x128xbf16>
    %c320 = arith.constant 320 : index
    %c0_46 = arith.constant 0 : index
    %116 = vector.load %arg5[%c320, %c0_46] : memref<704x128xbf16, #tpu.memory_space<vmem>>, vector<128x128xbf16>
    %cst_47 = arith.constant dense<0.000000e+00> : vector<128x128xf32>
    %117 = tpu.matmul %115, %116, %cst_47 {dimension_numbers = #tpu.dot_dimension_numbers<[1], [0], [0], [1], [0, 0, 1, 1], [], []>} : vector<128x128xbf16>, vector<128x128xbf16>, vector<128x128xf32> -> vector<128x128xf32>
    %c3 = arith.constant 3 : index
    %c0_48 = arith.constant 0 : index
    %118 = vector.load %arg6[%c3, %c0_48] : memref<8x128xf32, #tpu.memory_space<vmem>>, vector<1x128xf32>
    %119 = vector.broadcast %118 : vector<1x128xf32> to vector<128x128xf32>
    %120 = arith.addf %117, %119 : vector<128x128xf32>
    %c0_49 = arith.constant 0 : index
    %c0_50 = arith.constant 0 : index
    %121 = vector.load %arg10[%c0_49, %c0_50] : memref<64x128xf32, #tpu.memory_space<vmem>>, vector<64x128xf32>
    %122 = arith.truncf %120 : vector<128x128xf32> to vector<128x128xbf16>
    %cst_51 = arith.constant dense<0.000000e+00> : vector<64x128xf32>
    %123 = tpu.matmul %16, %122, %cst_51 {dimension_numbers = #tpu.dot_dimension_numbers<[1], [0], [0], [1], [0, 0, 1, 1], [], []>} : vector<64x128xbf16>, vector<128x128xbf16>, vector<64x128xf32> -> vector<64x128xf32>
    %124 = arith.addf %121, %123 : vector<64x128xf32>
    %c0_52 = arith.constant 0 : index
    %c0_53 = arith.constant 0 : index
    %125 = vector.load %arg10[%c0_52, %c0_53] : memref<64x128xf32, #tpu.memory_space<vmem>>, vector<64x128xf32>
    tpu.vector_store %arg10[%c0_52, %c0_53], %124 {strides = array<i32>} : memref<64x128xf32, #tpu.memory_space<vmem>>, vector<64x128xf32>,
    %c2_i32 = arith.constant 2 : i32
    %126 = arith.cmpi eq, %arg0, %c2_i32 : i32
    %127 = arith.extui %126 : i1 to i32
    %c0_i32_54 = arith.constant 0 : i32
    %128 = arith.cmpi ne, %127, %c0_i32_54 : i32
    scf.if %128 {
      %c0_55 = arith.constant 0 : index
      %c0_56 = arith.constant 0 : index
      %129 = vector.load %arg8[%c0_55, %c0_56] : memref<64x128xf32, #tpu.memory_space<vmem>>, vector<64x128xf32>
      %c0_57 = arith.constant 0 : index
      %c0_58 = arith.constant 0 : index
      %130 = vector.load %arg10[%c0_57, %c0_58] : memref<64x128xf32, #tpu.memory_space<vmem>>, vector<64x128xf32>
      %131 = arith.addf %129, %130 : vector<64x128xf32>
      %132 = arith.truncf %131 : vector<64x128xf32> to vector<64x128xbf16>
      %c448 = arith.constant 448 : index
      %c0_59 = arith.constant 0 : index
      %133 = vector.load %arg5[%c448, %c0_59] : memref<704x128xbf16, #tpu.memory_space<vmem>>, vector<128x128xbf16>
      %cst_60 = arith.constant dense<0.000000e+00> : vector<64x128xf32>
      %134 = tpu.matmul %132, %133, %cst_60 {dimension_numbers = #tpu.dot_dimension_numbers<[1], [0], [0], [1], [0, 0, 1, 1], [], []>} : vector<64x128xbf16>, vector<128x128xbf16>, vector<64x128xf32> -> vector<64x128xf32>
      %c4 = arith.constant 4 : index
      %c0_61 = arith.constant 0 : index
      %135 = vector.load %arg6[%c4, %c0_61] : memref<8x128xf32, #tpu.memory_space<vmem>>, vector<1x128xf32>
      %136 = vector.broadcast %135 : vector<1x128xf32> to vector<64x128xf32>
      %137 = arith.addf %134, %136 : vector<64x128xf32>
      %cst_62 = arith.constant 0.000000e+00 : f32
      %138 = vector.broadcast %cst_62 : f32 to vector<64x128xf32>
      %139 = arith.maximumf %137, %138 : vector<64x128xf32>
      %140 = arith.truncf %139 : vector<64x128xf32> to vector<64x128xbf16>
      %c576 = arith.constant 576 : index
      %c0_63 = arith.constant 0 : index
      %141 = vector.load %arg5[%c576, %c0_63] : memref<704x128xbf16, #tpu.memory_space<vmem>>, vector<128x128xbf16>
      %cst_64 = arith.constant dense<0.000000e+00> : vector<64x128xf32>
      %142 = tpu.matmul %140, %141, %cst_64 {dimension_numbers = #tpu.dot_dimension_numbers<[1], [0], [0], [1], [0, 0, 1, 1], [], []>} : vector<64x128xbf16>, vector<128x128xbf16>, vector<64x128xf32> -> vector<64x128xf32>
      %c5 = arith.constant 5 : index
      %c0_65 = arith.constant 0 : index
      %143 = vector.load %arg6[%c5, %c0_65] : memref<8x128xf32, #tpu.memory_space<vmem>>, vector<1x128xf32>
      %144 = vector.broadcast %143 : vector<1x128xf32> to vector<64x128xf32>
      %145 = arith.addf %142, %144 : vector<64x128xf32>
      %c0_66 = arith.constant 0 : index
      %c0_67 = arith.constant 0 : index
      %146 = vector.load %arg7[%c0_66, %c0_67] : memref<64x128xf32, #tpu.memory_space<vmem>>, vector<64x128xf32>
      tpu.vector_store %arg7[%c0_66, %c0_67], %145 {strides = array<i32>} : memref<64x128xf32, #tpu.memory_space<vmem>>, vector<64x128xf32>,
    } else {
    }
    return
  }
  func.func @transform_0(%arg0: i32) -> (i32, i32) {
    %c0_i32 = arith.constant 0 : i32
    %c0_i32_0 = arith.constant 0 : i32
    %c0_i32_1 = arith.constant 0 : i32
    return %c0_i32, %c0_i32_0 : i32, i32
  }
  func.func @transform_1(%arg0: i32) -> (i32, i32) {
    %c0_i32 = arith.constant 0 : i32
    %c0_i32_0 = arith.constant 0 : i32
    return %arg0, %c0_i32 : i32, i32
  }
  func.func @transform_2(%arg0: i32) -> (i32, i32) {
    %c0_i32 = arith.constant 0 : i32
    %c0_i32_0 = arith.constant 0 : i32
    return %arg0, %c0_i32 : i32, i32
  }
  func.func @transform_3(%arg0: i32) -> (i32, i32) {
    %c0_i32 = arith.constant 0 : i32
    %c0_i32_0 = arith.constant 0 : i32
    return %c0_i32, %arg0 : i32, i32
  }
  func.func @transform_4(%arg0: i32) -> (i32, i32) {
    %c0_i32 = arith.constant 0 : i32
    %c0_i32_0 = arith.constant 0 : i32
    %c0_i32_1 = arith.constant 0 : i32
    return %c0_i32, %c0_i32_0 : i32, i32
  }
  func.func @transform_5(%arg0: i32) -> (i32, i32) {
    %c0_i32 = arith.constant 0 : i32
    %c0_i32_0 = arith.constant 0 : i32
    %c0_i32_1 = arith.constant 0 : i32
    return %c0_i32, %c0_i32_0 : i32, i32
  }
  func.func @transform_6(%arg0: i32) -> (i32, i32) {
    %c0_i32 = arith.constant 0 : i32
    %c0_i32_0 = arith.constant 0 : i32
    %c0_i32_1 = arith.constant 0 : i32
    return %c0_i32, %c0_i32_0 : i32, i32
  }
}

</mosaic_0001>

<llo_original>
// kernel: schnet_interaction.1
$region0: #{schnet_interaction.1}
  #allocation0 [shape = 'u32[]', space=smem, size = 0x4, offset = 0x4, fixed_abs, tag = 'smem constant byte address 0x4 - core index']
  #allocation1 [shape = 'u32[72,128]{1,0:T(1,128)}', space=vmem, size = 0x9000, scoped, tag = 'internal scratch']
  #allocation2 [shape = 'f32[64,128]{1,0:T(8,128)}', space=vmem, size = 0x8000, scoped, tag = 'scratch operand']
  #allocation3 [shape = 'bf16[64,128]{1,0:T(8,128)(2,1)}', space=vmem, size = 0x4000, scoped, tag = 'scratch operand']
  #allocation4 [shape = 'f32[64,128]{1,0:T(8,128)}', space=vmem, size = 0x8000, scoped, tag = 'scratch operand']
  %s0 = inlined_call_operand.vmem [shape: f32[64,16], index: 0, kind: input, shape index: {}]
  %s1 = inlined_call_operand.vmem [shape: bf16[384,48], index: 1, kind: input, shape index: {}]
  %s2 = inlined_call_operand.vmem [shape: s32[384,1], index: 2, kind: input, shape index: {}]
  %s3 = inlined_call_operand.vmem [shape: s32[1,384], index: 3, kind: input, shape index: {}]
  %s4 = inlined_call_operand.vmem [shape: bf16[704,128], index: 4, kind: input, shape index: {}]
  %s5 = inlined_call_operand.vmem [shape: f32[8,128], index: 5, kind: input, shape index: {}]
  %s6 = inlined_call_operand.vmem [shape: f32[64,128], index: 6, kind: output, shape index: {}]
  %s7 = sld [smem:[#allocation0]]
  $region65: #{schnet_interaction.1} parent=0
    _
  %s9 = ssub.s32 1, %s7
  %s10 = scalar_select 0, %s9, %s7
  loop: start=0, step=1, limit=5
  $region2: #{schnet_interaction.1} parent=0 // loop_pre_header
    _
  $region3: #{schnet_interaction.1} parent=0 // loop_header
    %s12 = sphi 0, %s16
    %p13 = scmp.ge.s32.totalorder %s12, 5
    %s20 = sphi 0, %s20
    %s22 = sphi 0, %s20
    %s23 = sphi 0, %s22
    %s37 = sphi 0, %s23
    %s43 = sphi 0, %s45
    %s46 = sphi 0, %s43
    %s47 = sphi 0, %s46
    %s63 = sphi 0, %s47
    %s69 = sphi 0, %s71
    %s72 = sphi 0, %s69
    %s73 = sphi 0, %s72
    %s89 = sphi 0, %s73
    %s95 = sphi 0, %s97
    %s98 = sphi 0, %s95
    %s99 = sphi 0, %s98
    %s115 = sphi 0, %s99
    %s119 = sphi 0, %s119
    %s121 = sphi 0, %s119
    %s122 = sphi 0, %s121
    %s136 = sphi 0, %s122
    %s140 = sphi 0, %s140
    %s142 = sphi 0, %s140
    %s143 = sphi 0, %s142
    %s157 = sphi 0, %s143
    %s161 = sphi 0, %s161
    %s163 = sphi 0, %s161
    %s164 = sphi 0, %s163
    %s178 = sphi 0, %s164
  $region4: #{schnet_interaction.1} parent=0 // loop_header_branch
    %15 = sbr.rel (%p13) target = $region8
  $region5: #{schnet_interaction.1} parent=0 // loop_body
    %s17 = ssub.s32 %s12, 1
    %s18 = ssub.s32 %s12, 2
    %s19 = sadd.s32 %s12, 1
    %s21 = sadd.s32 %s20, 1
    %p24 = scmp.eq.s32.totalorder %s12, 2
    %p25 = scmp.ne.s32.totalorder %s20, %s22
    %p26 = scmp.eq.s32.totalorder %s12, 0
    %p27 = por %p25, %p26
    %p28 = scmp.ne.s32.totalorder %s20, %s22
    %p29 = scmp.eq.s32.totalorder %s17, 2
    %p30 = por %p28, %p29
    %p31 = scmp.ne.s32.totalorder %s22, %s23
    %p32 = scmp.eq.s32.totalorder %s17, 0
    %p33 = por %p31, %p32
    %p34 = scmp.ne.s32.totalorder %s22, %s23
    %p35 = scmp.eq.s32.totalorder %s18, 2
    %p36 = por %p34, %p35
    %p38 = scmp.ne.s32.totalorder %s23, %s37
    %p39 = scmp.eq.s32.totalorder %s18, 0
    %p40 = por %p38, %p39
    %s41 = ssub.s32 %s12, %s19
    %p42 = scmp.eq.s32.totalorder %s41, 0
    %s44 = sadd.s32 %s43, 1
    %s45 = scalar_select %p42, %s43, %s44
    %p48 = pneg %p42
    %p49 = scmp.eq.s32.totalorder %s12, 2
    %p50 = por %p48, %p49
    %p51 = scmp.ne.s32.totalorder %s43, %s46
    %p52 = scmp.eq.s32.totalorder %s12, 0
    %p53 = por %p51, %p52
    %p54 = scmp.ne.s32.totalorder %s43, %s46
    %p55 = scmp.eq.s32.totalorder %s17, 2
    %p56 = por %p54, %p55
    %p57 = scmp.ne.s32.totalorder %s46, %s47
    %p58 = scmp.eq.s32.totalorder %s17, 0
    %p59 = por %p57, %p58
    %p60 = scmp.ne.s32.totalorder %s46, %s47
    %p61 = scmp.eq.s32.totalorder %s18, 2
    %p62 = por %p60, %p61
    %p64 = scmp.ne.s32.totalorder %s47, %s63
    %p65 = scmp.eq.s32.totalorder %s18, 0
    %p66 = por %p64, %p65
    %s67 = ssub.s32 %s12, %s19
    %p68 = scmp.eq.s32.totalorder %s67, 0
    %s70 = sadd.s32 %s69, 1
    %s71 = scalar_select %p68, %s69, %s70
    %p74 = pneg %p68
    %p75 = scmp.eq.s32.totalorder %s12, 2
    %p76 = por %p74, %p75
    %p77 = scmp.ne.s32.totalorder %s69, %s72
    %p78 = scmp.eq.s32.totalorder %s12, 0
    %p79 = por %p77, %p78
    %p80 = scmp.ne.s32.totalorder %s69, %s72
    %p81 = scmp.eq.s32.totalorder %s17, 2
    %p82 = por %p80, %p81
    %p83 = scmp.ne.s32.totalorder %s72, %s73
    %p84 = scmp.eq.s32.totalorder %s17, 0
    %p85 = por %p83, %p84
    %p86 = scmp.ne.s32.totalorder %s72, %s73
    %p87 = scmp.eq.s32.totalorder %s18, 2
    %p88 = por %p86, %p87
    %p90 = scmp.ne.s32.totalorder %s73, %s89
    %p91 = scmp.eq.s32.totalorder %s18, 0
    %p92 = por %p90, %p91
    %s93 = ssub.s32 %s12, %s19
    %p94 = scmp.eq.s32.totalorder %s93, 0
    %s96 = sadd.s32 %s95, 1
    %s97 = scalar_select %p94, %s95, %s96
    %p100 = pneg %p94
    %p101 = scmp.eq.s32.totalorder %s12, 2
    %p102 = por %p100, %p101
    %p103 = scmp.ne.s32.totalorder %s95, %s98
    %p104 = scmp.eq.s32.totalorder %s12, 0
    %p105 = por %p103, %p104
    %p106 = scmp.ne.s32.totalorder %s95, %s98
    %p107 = scmp.eq.s32.totalorder %s17, 2
    %p108 = por %p106, %p107
    %p109 = scmp.ne.s32.totalorder %s98, %s99
    %p110 = scmp.eq.s32.totalorder %s17, 0
    %p111 = por %p109, %p110
    %p112 = scmp.ne.s32.totalorder %s98, %s99
    %p113 = scmp.eq.s32.totalorder %s18, 2
    %p114 = por %p112, %p113
    %p116 = scmp.ne.s32.totalorder %s99, %s115
    %p117 = scmp.eq.s32.totalorder %s18, 0
    %p118 = por %p116, %p117
    %s120 = sadd.s32 %s119, 1
    %p123 = scmp.eq.s32.totalorder %s12, 2
    %p124 = scmp.ne.s32.totalorder %s119, %s121
    %p125 = scmp.eq.s32.totalorder %s12, 0
    %p126 = por %p124, %p125
    %p127 = scmp.ne.s32.totalorder %s119, %s121
    %p128 = scmp.eq.s32.totalorder %s17, 2
    %p129 = por %p127, %p128
    %p130 = scmp.ne.s32.totalorder %s121, %s122
    %p131 = scmp.eq.s32.totalorder %s17, 0
    %p132 = por %p130, %p131
    %p133 = scmp.ne.s32.totalorder %s121, %s122
    %p134 = scmp.eq.s32.totalorder %s18, 2
    %p135 = por %p133, %p134
    %p137 = scmp.ne.s32.totalorder %s122, %s136
    %p138 = scmp.eq.s32.totalorder %s18, 0
    %p139 = por %p137, %p138
    %s141 = sadd.s32 %s140, 1
    %p144 = scmp.eq.s32.totalorder %s12, 2
    %p145 = scmp.ne.s32.totalorder %s140, %s142
    %p146 = scmp.eq.s32.totalorder %s12, 0
    %p147 = por %p145, %p146
    %p148 = scmp.ne.s32.totalorder %s140, %s142
    %p149 = scmp.eq.s32.totalorder %s17, 2
    %p150 = por %p148, %p149
    %p151 = scmp.ne.s32.totalorder %s142, %s143
    %p152 = scmp.eq.s32.totalorder %s17, 0
    %p153 = por %p151, %p152
    %p154 = scmp.ne.s32.totalorder %s142, %s143
    %p155 = scmp.eq.s32.totalorder %s18, 2
    %p156 = por %p154, %p155
    %p158 = scmp.ne.s32.totalorder %s143, %s157
    %p159 = scmp.eq.s32.totalorder %s18, 0
    %p160 = por %p158, %p159
    %s162 = sadd.s32 %s161, 1
    %p165 = scmp.eq.s32.totalorder %s12, 2
    %p166 = scmp.ne.s32.totalorder %s161, %s163
    %p167 = scmp.eq.s32.totalorder %s12, 0
    %p168 = por %p166, %p167
    %p169 = scmp.ne.s32.totalorder %s161, %s163
    %p170 = scmp.eq.s32.totalorder %s17, 2
    %p171 = por %p169, %p170
    %p172 = scmp.ne.s32.totalorder %s163, %s164
    %p173 = scmp.eq.s32.totalorder %s17, 0
    %p174 = por %p172, %p173
    %p175 = scmp.ne.s32.totalorder %s163, %s164
    %p176 = scmp.eq.s32.totalorder %s18, 2
    %p177 = por %p175, %p176
    %p179 = scmp.ne.s32.totalorder %s164, %s178
    %p180 = scmp.eq.s32.totalorder %s18, 0
    %p181 = por %p179, %p180
    %p182 = scmp.le.s32.totalorder 1, %s12
    %p183 = scmp.lt.s32.totalorder %s12, 4
    %p184 = pnand %p182, %p183
    %p185 = pneg %p184
    // Predicated region
    $region9: #{schnet_interaction.1} parent=5 // pred_check
      _
    $region10: #{schnet_interaction.1} parent=5 // pred_check_branch
      %187 = sbr.rel (%p184) target = $region12
    $region11: #{schnet_interaction.1} parent=5 // pred_region
      %s188 = ssub.s32 %s12, 1
      // Predicated region
      $region13: #{schnet_interaction.1} parent=11 // pred_check
        %p189 = pneg %p33
      $region14: #{schnet_interaction.1} parent=11 // pred_check_branch
        %191 = sbr.rel (%p189) target = $region16
      $region15: #{schnet_interaction.1} parent=11 // pred_region
        _
      $region16: #{schnet_interaction.1} parent=11 // pred_fallthru
        _
      // Predicated region
      $region17: #{schnet_interaction.1} parent=11 // pred_check
        %p192 = pneg %p132
      $region18: #{schnet_interaction.1} parent=11 // pred_check_branch
        %194 = sbr.rel (%p192) target = $region20
      $region19: #{schnet_interaction.1} parent=11 // pred_region
        _
      $region20: #{schnet_interaction.1} parent=11 // pred_fallthru
        _
      // Predicated region
      $region21: #{schnet_interaction.1} parent=11 // pred_check
        %p195 = pneg %p153
      $region22: #{schnet_interaction.1} parent=11 // pred_check_branch
        %197 = sbr.rel (%p195) target = $region24
      $region23: #{schnet_interaction.1} parent=11 // pred_region
        _
      $region24: #{schnet_interaction.1} parent=11 // pred_fallthru
        _
    $region12: #{schnet_interaction.1} parent=5 // pred_fallthru
      _
    %p198 = scmp.lt.s32.totalorder %s12, 3
    // Predicated region
    $region25: #{schnet_interaction.1} parent=5 // pred_check
      %p199 = pneg %p198
    $region26: #{schnet_interaction.1} parent=5 // pred_check_branch
      %201 = sbr.rel (%p199) target = $region28
    $region27: #{schnet_interaction.1} parent=5 // pred_region
      // Predicated region
      $region29: #{schnet_interaction.1} parent=27 // pred_check
        %p202 = pneg %p53
      $region30: #{schnet_interaction.1} parent=27 // pred_check_branch
        %204 = sbr.rel (%p202) target = $region32
      $region31: #{schnet_interaction.1} parent=27 // pred_region
        %s205 = smul.u32 16, %s12
        %p206 = scmp.lt.s32.totalorder %s205, 47
        %s207 = scalar_select %p206, %s205, 47
        %s208 = smul.addr %s207, 4
        %s209 = scalar_lea.vmem %s1, %s208
        %s210 = smul.u32 16, %s12
      $region32: #{schnet_interaction.1} parent=27 // pred_fallthru
        _
      // Predicated region
      $region33: #{schnet_interaction.1} parent=27 // pred_check
        %p211 = pneg %p79
      $region34: #{schnet_interaction.1} parent=27 // pred_check_branch
        %213 = sbr.rel (%p211) target = $region36
      $region35: #{schnet_interaction.1} parent=27 // pred_region
        %s214 = smul.u32 16, %s12
        %p215 = scmp.lt.s32.totalorder %s214, 47
        %s216 = scalar_select %p215, %s214, 47
        %s217 = smul.addr %s216, 8
        %s218 = scalar_lea.vmem %s2, %s217
        %s219 = smul.u32 16, %s12
      $region36: #{schnet_interaction.1} parent=27 // pred_fallthru
        _
      // Predicated region
      $region37: #{schnet_interaction.1} parent=27 // pred_check
        %p220 = pneg %p105
      $region38: #{schnet_interaction.1} parent=27 // pred_check_branch
        %222 = sbr.rel (%p220) target = $region40
      $region39: #{schnet_interaction.1} parent=27 // pred_region
        %p223 = scmp.lt.s32.totalorder %s12, 2
        %s224 = scalar_select %p223, %s12, 2
        %s225 = scalar_lea.vmem %s3, %s224
      $region40: #{schnet_interaction.1} parent=27 // pred_fallthru
        _
    $region28: #{schnet_interaction.1} parent=5 // pred_fallthru
      _
    %p226 = scmp.le.s32.totalorder 1, %s12
    %p227 = scmp.lt.s32.totalorder %s12, 4
    %p228 = pnand %p226, %p227
    %p229 = pneg %p228
    // Predicated region
    $region41: #{schnet_interaction.1} parent=5 // pred_check
      _
    $region42: #{schnet_interaction.1} parent=5 // pred_check_branch
      %231 = sbr.rel (%p228) target = $region44
    $region43: #{schnet_interaction.1} parent=5 // pred_region
      %s232 = ssub.s32 %s12, 1
      %p233 = pneg %p33
      %p234 = pneg %p30
      %s235 = smul.u32 16, %s17
      %p236 = scmp.lt.s32.totalorder %s235, 47
      %s237 = scalar_select %p236, %s235, 47
      %s238 = smul.addr %s237, 4
      %s239 = scalar_lea.vmem %s1, %s238
      %p240 = pneg %p59
      %p241 = pneg %p56
      %s242 = smul.u32 16, %s17
      %p243 = scmp.lt.s32.totalorder %s242, 47
      %s244 = scalar_select %p243, %s242, 47
      %s245 = smul.addr %s244, 8
      %s246 = scalar_lea.vmem %s2, %s245
      %p247 = pneg %p85
      %p248 = pneg %p82
      %p249 = scmp.lt.s32.totalorder %s17, 2
      %s250 = scalar_select %p249, %s17, 2
      %s251 = scalar_lea.vmem %s3, %s250
      %p252 = pneg %p111
      %p253 = pneg %p108
      %p254 = pneg %p132
      %p255 = pneg %p129
      %p256 = pneg %p153
      %p257 = pneg %p150
      %p258 = pneg %p174
      %p259 = pneg %p171
      %s260 = smul.u32 16, %s17
      %p261 = scmp.lt.s32.totalorder %s260, 47
      %s262 = scalar_select %p261, %s260, 47
      %s263 = smul.addr %s262, 4
      %s264 = scalar_lea.vmem %s1, %s263
      %s265 = smul.u32 16, %s17
      %s266 = smul.u32 16, %s17
      %p267 = scmp.lt.s32.totalorder %s266, 47
      %s268 = scalar_select %p267, %s266, 47
      %s269 = smul.addr %s268, 8
      %s270 = scalar_lea.vmem %s2, %s269
      %s271 = smul.u32 16, %s17
      %p272 = scmp.lt.s32.totalorder %s17, 2
      %s273 = scalar_select %p272, %s17, 2
      %s274 = scalar_lea.vmem %s3, %s273
      %p276 = scmp.eq.s32.totalorder %s17, 0
      // Predicated region
      $region45: #{schnet_interaction.1} parent=43 // pred_check
        %p277 = pneg %p276
      $region46: #{schnet_interaction.1} parent=43 // pred_check_branch
        %279 = sbr.rel (%p277) target = $region48
      $region47: #{schnet_interaction.1} parent=43 // pred_region
        %v280 = vld [vmem:[%s0] sm:$0xff]
        %v281 = vld [vmem:[%s0 + $0x8] sm:$0xff]
        %v282 = vld [vmem:[%s0 + $0x10] sm:$0xff]
        %v283 = vld [vmem:[%s0 + $0x18] sm:$0xff]
        %v284 = vld [vmem:[%s0 + $0x20] sm:$0xff]
        %v285 = vld [vmem:[%s0 + $0x28] sm:$0xff]
        %v286 = vld [vmem:[%s0 + $0x30] sm:$0xff]
        %v287 = vld [vmem:[%s0 + $0x38] sm:$0xff]
        %v288 = vpack.c.bf16 %v281, %v280
        %v289 = vpack.c.bf16 %v283, %v282
        %v290 = vpack.c.bf16 %v285, %v284
        %v291 = vpack.c.bf16 %v287, %v286
        %v292 = vld [vmem:[%s4] sm:$0xf]
        %v293 = vld [vmem:[%s4 + $0x4] sm:$0xf]
        %v294 = vld [vmem:[%s5] sm:$0x1]
        %v295 = vperm.slane %v294, 0
        %v298 = vunpack.c.l.b16 %v292
        %v299 = vunpack.c.l.b16 %v293
        %v300 = vpack.c.b16 %v299, %v298
        %vm302 = vcmask 130048
        %v304 = vsel %vm302, %v288, 0
        %v307 = vsel %vm302, %v289, 0
        %v310 = vsel %vm302, %v290, 0
        %v313 = vsel %vm302, %v291, 0
        %315 = vmatpush.bf16.msra.mxu0 0
        %316 = vmatpush.bf16.msra.mxu0 0
        %317 = vmatpush.bf16.msra.mxu0 0
        %318 = vmatpush.bf16.msra.mxu0 0
        %319 = vmatpush.bf16.msra.mxu0 0
        %320 = vmatpush.bf16.msra.mxu0 0
        %321 = vmatpush.bf16.msra.mxu0 0
        %322 = vmatpush.bf16.msra.mxu0 %v300
        %323 = vmatmul.bf16.gmra.mxu0 %v304
        %v324 = vpop.f32.mrf.mxu0
        %v325 = vadd.f32 %v295, %v324
        %v326 = vpop.f32.mrf.mxu0
        %v327 = vadd.f32 %v295, %v326
        %328 = vmatmul.bf16.gmra.mxu0 %v307
        %v329 = vpop.f32.mrf.mxu0
        %v330 = vadd.f32 %v295, %v329
        %v331 = vpop.f32.mrf.mxu0
        %v332 = vadd.f32 %v295, %v331
        %333 = vmatmul.bf16.gmra.mxu0 %v310
        %v334 = vpop.f32.mrf.mxu0
        %v335 = vadd.f32 %v295, %v334
        %v336 = vpop.f32.mrf.mxu0
        %v337 = vadd.f32 %v295, %v336
        %338 = vmatmul.bf16.gmra.mxu0 %v313
        %v339 = vpop.f32.mrf.mxu0
        %v340 = vadd.f32 %v295, %v339
        %v341 = vpop.f32.mrf.mxu0
        %v342 = vadd.f32 %v295, %v341
        %343 = vdwg.mxu0
        %344 = vst [vmem:[#allocation2] sm:$0xff] %v325
        %345 = vst [vmem:[#allocation2 + $0x8] sm:$0xff] %v327
        %346 = vst [vmem:[#allocation2 + $0x10] sm:$0xff] %v330
        %347 = vst [vmem:[#allocation2 + $0x18] sm:$0xff] %v332
        %348 = vst [vmem:[#allocation2 + $0x20] sm:$0xff] %v335
        %349 = vst [vmem:[#allocation2 + $0x28] sm:$0xff] %v337
        %350 = vst [vmem:[#allocation2 + $0x30] sm:$0xff] %v340
        %351 = vst [vmem:[#allocation2 + $0x38] sm:$0xff] %v342
        %v352 = vpack.c.bf16 %v325, %v325
        %v353 = vpack.c.bf16 %v327, %v327
        %v354 = vpack.c.bf16 %v330, %v330
        %v355 = vpack.c.bf16 %v332, %v332
        %v356 = vpack.c.bf16 %v335, %v335
        %v357 = vpack.c.bf16 %v337, %v337
        %v358 = vpack.c.bf16 %v340, %v340
        %v359 = vpack.c.bf16 %v342, %v342
        %360 = vst [vmem:[#allocation3] sm:$0xf] %v352
        %361 = vst [vmem:[#allocation3 + $0x4] sm:$0xf] %v353
        %362 = vst [vmem:[#allocation3 + $0x8] sm:$0xf] %v354
        %363 = vst [vmem:[#allocation3 + $0xc] sm:$0xf] %v355
        %364 = vst [vmem:[#allocation3 + $0x10] sm:$0xf] %v356
        %365 = vst [vmem:[#allocation3 + $0x14] sm:$0xf] %v357
        %366 = vst [vmem:[#allocation3 + $0x18] sm:$0xf] %v358
        %367 = vst [vmem:[#allocation3 + $0x1c] sm:$0xf] %v359
        %368 = vst [vmem:[#allocation4] sm:$0xff] 0.0
        %369 = vst [vmem:[#allocation4 + $0x8] sm:$0xff] 0.0
        %370 = vst [vmem:[#allocation4 + $0x10] sm:$0xff] 0.0
        %371 = vst [vmem:[#allocation4 + $0x18] sm:$0xff] 0.0
        %372 = vst [vmem:[#allocation4 + $0x20] sm:$0xff] 0.0
        %373 = vst [vmem:[#allocation4 + $0x28] sm:$0xff] 0.0
        %374 = vst [vmem:[#allocation4 + $0x30] sm:$0xff] 0.0
        %375 = vst [vmem:[#allocation4 + $0x38] sm:$0xff] 0.0
      $region48: #{schnet_interaction.1} parent=43 // pred_fallthru
        _
      %v376 = vlaneseq
      %v377 = vand.u32 %v376, 127
      %v378 = vlaneseq
      %v379 = vshrl.u32 %v378, 7
      %v380 = vadd.s32 %v379, 8
      %v381 = vadd.s32 %v379, 16
      %v382 = vadd.s32 %v379, 24
      %v383 = vadd.s32 %v379, 32
      %v384 = vadd.s32 %v379, 40
      %v385 = vadd.s32 %v379, 48
      %v386 = vadd.s32 %v379, 56
      %v387 = vld [vmem:[%s270] sm:$0xff]
      %v388 = vld [vmem:[%s270 + $0x8] sm:$0xff]
      %v389 = vld [vmem:[%s270 + $0x10] sm:$0xff]
      %v390 = vld [vmem:[%s270 + $0x18] sm:$0xff]
      %v391 = vld [vmem:[%s270 + $0x20] sm:$0xff]
      %v392 = vld [vmem:[%s270 + $0x28] sm:$0xff]
      %v393 = vld [vmem:[%s270 + $0x30] sm:$0xff]
      %v394 = vld [vmem:[%s270 + $0x38] sm:$0xff]
      %v395 = vld [vmem:[%s270 + $0x40] sm:$0xff]
      %v396 = vld [vmem:[%s270 + $0x48] sm:$0xff]
      %v397 = vld [vmem:[%s270 + $0x50] sm:$0xff]
      %v398 = vld [vmem:[%s270 + $0x58] sm:$0xff]
      %v399 = vld [vmem:[%s270 + $0x60] sm:$0xff]
      %v400 = vld [vmem:[%s270 + $0x68] sm:$0xff]
      %v401 = vld [vmem:[%s270 + $0x70] sm:$0xff]
      %v402 = vld [vmem:[%s270 + $0x78] sm:$0xff]
      %403 = vset.pattern.permute.xlu0 0
      %404 = vperm.xlu0 %403, %v387
      %v405 = vpop.permute.xlu0 %404
      %406 = vset.pattern.permute.xlu0 0
      %407 = vperm.xlu0 %406, %v388
      %v408 = vpop.permute.xlu0 %407
      %409 = vset.pattern.permute.xlu0 0
      %410 = vperm.xlu0 %409, %v389
      %v411 = vpop.permute.xlu0 %410
      %412 = vset.pattern.permute.xlu0 0
      %413 = vperm.xlu0 %412, %v390
      %v414 = vpop.permute.xlu0 %413
      %415 = vset.pattern.permute.xlu0 0
      %416 = vperm.xlu0 %415, %v391
      %v417 = vpop.permute.xlu0 %416
      %418 = vset.pattern.permute.xlu0 0
      %419 = vperm.xlu0 %418, %v392
      %v420 = vpop.permute.xlu0 %419
      %421 = vset.pattern.permute.xlu0 0
      %422 = vperm.xlu0 %421, %v393
      %v423 = vpop.permute.xlu0 %422
      %424 = vset.pattern.permute.xlu0 0
      %425 = vperm.xlu0 %424, %v394
      %v426 = vpop.permute.xlu0 %425
      %427 = vset.pattern.permute.xlu0 0
      %428 = vperm.xlu0 %427, %v395
      %v429 = vpop.permute.xlu0 %428
      %430 = vset.pattern.permute.xlu0 0
      %431 = vperm.xlu0 %430, %v396
      %v432 = vpop.permute.xlu0 %431
      %433 = vset.pattern.permute.xlu0 0
      %434 = vperm.xlu0 %433, %v397
      %v435 = vpop.permute.xlu0 %434
      %436 = vset.pattern.permute.xlu0 0
      %437 = vperm.xlu0 %436, %v398
      %v438 = vpop.permute.xlu0 %437
      %439 = vset.pattern.permute.xlu0 0
      %440 = vperm.xlu0 %439, %v399
      %v441 = vpop.permute.xlu0 %440
      %442 = vset.pattern.permute.xlu0 0
      %443 = vperm.xlu0 %442, %v400
      %v444 = vpop.permute.xlu0 %443
      %445 = vset.pattern.permute.xlu0 0
      %446 = vperm.xlu0 %445, %v401
      %v447 = vpop.permute.xlu0 %446
      %448 = vset.pattern.permute.xlu0 0
      %449 = vperm.xlu0 %448, %v402
      %v450 = vpop.permute.xlu0 %449
      %vm451 = vcmp.eq.s32.totalorder %v377, %v405
      %vm452 = vcmp.eq.s32.totalorder %v377, %v408
      %vm453 = vcmp.eq.s32.totalorder %v377, %v411
      %vm454 = vcmp.eq.s32.totalorder %v377, %v414
      %vm455 = vcmp.eq.s32.totalorder %v377, %v417
      %vm456 = vcmp.eq.s32.totalorder %v377, %v420
      %vm457 = vcmp.eq.s32.totalorder %v377, %v423
      %vm458 = vcmp.eq.s32.totalorder %v377, %v426
      %vm459 = vcmp.eq.s32.totalorder %v377, %v429
      %vm460 = vcmp.eq.s32.totalorder %v377, %v432
      %vm461 = vcmp.eq.s32.totalorder %v377, %v435
      %vm462 = vcmp.eq.s32.totalorder %v377, %v438
      %vm463 = vcmp.eq.s32.totalorder %v377, %v441
      %vm464 = vcmp.eq.s32.totalorder %v377, %v444
      %vm465 = vcmp.eq.s32.totalorder %v377, %v447
      %vm466 = vcmp.eq.s32.totalorder %v377, %v450
      %v467 = vsel %vm451, 1, 0
      %v468 = vsel %vm452, 1, 0
      %v469 = vsel %vm453, 1, 0
      %v470 = vsel %vm454, 1, 0
      %v471 = vsel %vm455, 1, 0
      %v472 = vsel %vm456, 1, 0
      %v473 = vsel %vm457, 1, 0
      %v474 = vsel %vm458, 1, 0
      %v475 = vsel %vm459, 1, 0
      %v476 = vsel %vm460, 1, 0
      %v477 = vsel %vm461, 1, 0
      %v478 = vsel %vm462, 1, 0
      %v479 = vsel %vm463, 1, 0
      %v480 = vsel %vm464, 1, 0
      %v481 = vsel %vm465, 1, 0
      %v482 = vsel %vm466, 1, 0
      %v483 = vcvt.s32.f32 %v467
      %v484 = vcvt.s32.f32 %v468
      %v485 = vcvt.s32.f32 %v469
      %v486 = vcvt.s32.f32 %v470
      %v487 = vcvt.s32.f32 %v471
      %v488 = vcvt.s32.f32 %v472
      %v489 = vcvt.s32.f32 %v473
      %v490 = vcvt.s32.f32 %v474
      %v491 = vcvt.s32.f32 %v475
      %v492 = vcvt.s32.f32 %v476
      %v493 = vcvt.s32.f32 %v477
      %v494 = vcvt.s32.f32 %v478
      %v495 = vcvt.s32.f32 %v479
      %v496 = vcvt.s32.f32 %v480
      %v497 = vcvt.s32.f32 %v481
      %v498 = vcvt.s32.f32 %v482
      %v499 = vpack.c.bf16 %v484, %v483
      %v500 = vpack.c.bf16 %v486, %v485
      %v501 = vpack.c.bf16 %v488, %v487
      %v502 = vpack.c.bf16 %v490, %v489
      %v503 = vpack.c.bf16 %v492, %v491
      %v504 = vpack.c.bf16 %v494, %v493
      %v505 = vpack.c.bf16 %v496, %v495
      %v506 = vpack.c.bf16 %v498, %v497
      %v507 = vld [vmem:[%s274] sm:$0x1]
      %v508 = vperm.slane %v507, 0
      %vm509 = vcmp.eq.s32.totalorder %v379, %v508
      %vm510 = vcmp.eq.s32.totalorder %v380, %v508
      %vm511 = vcmp.eq.s32.totalorder %v381, %v508
      %vm512 = vcmp.eq.s32.totalorder %v382, %v508
      %vm513 = vcmp.eq.s32.totalorder %v383, %v508
      %vm514 = vcmp.eq.s32.totalorder %v384, %v508
      %vm515 = vcmp.eq.s32.totalorder %v385, %v508
      %vm516 = vcmp.eq.s32.totalorder %v386, %v508
      %v517 = vsel %vm509, 1, 0
      %v518 = vsel %vm510, 1, 0
      %v519 = vsel %vm511, 1, 0
      %v520 = vsel %vm512, 1, 0
      %v521 = vsel %vm513, 1, 0
      %v522 = vsel %vm514, 1, 0
      %v523 = vsel %vm515, 1, 0
      %v524 = vsel %vm516, 1, 0
      %v525 = vcvt.s32.f32 %v517
      %v526 = vcvt.s32.f32 %v518
      %v527 = vcvt.s32.f32 %v519
      %v528 = vcvt.s32.f32 %v520
      %v529 = vcvt.s32.f32 %v521
      %v530 = vcvt.s32.f32 %v522
      %v531 = vcvt.s32.f32 %v523
      %v532 = vcvt.s32.f32 %v524
      %v533 = vpack.c.bf16 %v526, %v525
      %v534 = vpack.c.bf16 %v528, %v527
      %v535 = vpack.c.bf16 %v530, %v529
      %v536 = vpack.c.bf16 %v532, %v531
      %v537 = vld [vmem:[#allocation3] sm:$0xf]
      %v538 = vld [vmem:[#allocation3 + $0x4] sm:$0xf]
      %v539 = vld [vmem:[#allocation3 + $0x8] sm:$0xf]
      %v540 = vld [vmem:[#allocation3 + $0xc] sm:$0xf]
      %v541 = vld [vmem:[#allocation3 + $0x10] sm:$0xf]
      %v542 = vld [vmem:[#allocation3 + $0x14] sm:$0xf]
      %v543 = vld [vmem:[#allocation3 + $0x18] sm:$0xf]
      %v544 = vld [vmem:[#allocation3 + $0x1c] sm:$0xf]
      %v553 = vunpack.c.l.b16 %v537
      %v554 = vunpack.c.l.b16 %v538
      %v555 = vunpack.c.l.b16 %v539
      %v556 = vunpack.c.l.b16 %v540
      %v557 = vunpack.c.l.b16 %v541
      %v558 = vunpack.c.l.b16 %v542
      %v559 = vunpack.c.l.b16 %v543
      %v560 = vunpack.c.l.b16 %v544
      %v561 = vpack.c.b16 %v554, %v553
      %v562 = vpack.c.b16 %v556, %v555
      %v563 = vpack.c.b16 %v558, %v557
      %v564 = vpack.c.b16 %v560, %v559
      %vm569 = vcmask 523264
      %v571 = vsel %vm569, %v499, 0
      %v574 = vsel %vm569, %v500, 0
      %v577 = vsel %vm569, %v501, 0
      %v580 = vsel %vm569, %v502, 0
      %v583 = vsel %vm569, %v503, 0
      %v586 = vsel %vm569, %v504, 0
      %v589 = vsel %vm569, %v505, 0
      %v592 = vsel %vm569, %v506, 0
      %594 = vmatpush.bf16.msra.mxu0 0
      %595 = vmatpush.bf16.msra.mxu0 0
      %596 = vmatpush.bf16.msra.mxu0 0
      %597 = vmatpush.bf16.msra.mxu0 0
      %598 = vmatpush.bf16.msra.mxu0 %v564
      %599 = vmatpush.bf16.msra.mxu0 %v563
      %600 = vmatpush.bf16.msra.mxu0 %v562
      %601 = vmatpush.bf16.msra.mxu0 %v561
      %602 = vmatmul.bf16.gmra.mxu0 %v571
      %v603 = vpop.f32.mrf.mxu0
      %v604 = vadd.f32 0.0, %v603
      %v605 = vpop.f32.mrf.mxu0
      %v606 = vadd.f32 0.0, %v605
      %607 = vmatmul.bf16.gmra.mxu0 %v574
      %v608 = vpop.f32.mrf.mxu0
      %v609 = vadd.f32 0.0, %v608
      %v610 = vpop.f32.mrf.mxu0
      %v611 = vadd.f32 0.0, %v610
      %612 = vmatmul.bf16.gmra.mxu0 %v577
      %v613 = vpop.f32.mrf.mxu0
      %v614 = vadd.f32 0.0, %v613
      %v615 = vpop.f32.mrf.mxu0
      %v616 = vadd.f32 0.0, %v615
      %617 = vmatmul.bf16.gmra.mxu0 %v580
      %v618 = vpop.f32.mrf.mxu0
      %v619 = vadd.f32 0.0, %v618
      %v620 = vpop.f32.mrf.mxu0
      %v621 = vadd.f32 0.0, %v620
      %622 = vmatmul.bf16.gmra.mxu0 %v583
      %v623 = vpop.f32.mrf.mxu0
      %v624 = vadd.f32 0.0, %v623
      %v625 = vpop.f32.mrf.mxu0
      %v626 = vadd.f32 0.0, %v625
      %627 = vmatmul.bf16.gmra.mxu0 %v586
      %v628 = vpop.f32.mrf.mxu0
      %v629 = vadd.f32 0.0, %v628
      %v630 = vpop.f32.mrf.mxu0
      %v631 = vadd.f32 0.0, %v630
      %632 = vmatmul.bf16.gmra.mxu0 %v589
      %v633 = vpop.f32.mrf.mxu0
      %v634 = vadd.f32 0.0, %v633
      %v635 = vpop.f32.mrf.mxu0
      %v636 = vadd.f32 0.0, %v635
      %637 = vmatmul.bf16.gmra.mxu0 %v592
      %v638 = vpop.f32.mrf.mxu0
      %v639 = vadd.f32 0.0, %v638
      %v640 = vpop.f32.mrf.mxu0
      %v641 = vadd.f32 0.0, %v640
      %642 = vdwg.mxu0
      %v643 = vld [vmem:[%s264] sm:$0xf]
      %v644 = vld [vmem:[%s264 + $0x4] sm:$0xf]
      %v645 = vld [vmem:[%s264 + $0x8] sm:$0xf]
      %v646 = vld [vmem:[%s264 + $0xc] sm:$0xf]
      %v647 = vld [vmem:[%s264 + $0x10] sm:$0xf]
      %v648 = vld [vmem:[%s264 + $0x14] sm:$0xf]
      %v649 = vld [vmem:[%s264 + $0x18] sm:$0xf]
      %v650 = vld [vmem:[%s264 + $0x1c] sm:$0xf]
      %v651 = vld [vmem:[%s264 + $0x20] sm:$0xf]
      %v652 = vld [vmem:[%s264 + $0x24] sm:$0xf]
      %v653 = vld [vmem:[%s264 + $0x28] sm:$0xf]
      %v654 = vld [vmem:[%s264 + $0x2c] sm:$0xf]
      %v655 = vld [vmem:[%s264 + $0x30] sm:$0xf]
      %v656 = vld [vmem:[%s264 + $0x34] sm:$0xf]
      %v657 = vld [vmem:[%s264 + $0x38] sm:$0xf]
      %v658 = vld [vmem:[%s264 + $0x3c] sm:$0xf]
      %v659 = vld [vmem:[%s4 + $0x8] sm:$0xf]
      %v660 = vld [vmem:[%s4 + $0xc] sm:$0xf]
      %v661 = vld [vmem:[%s4 + $0x10] sm:$0xf]
      %v662 = vld [vmem:[%s4 + $0x14] sm:$0xf]
      %v663 = vld [vmem:[%s4 + $0x18] sm:$0xf]
      %v664 = vld [vmem:[%s4 + $0x1c] sm:$0xf]
      %v665 = vpack.c.bf16 %v606, %v604
      %v666 = vpack.c.bf16 %v611, %v609
      %v667 = vpack.c.bf16 %v616, %v614
      %v668 = vpack.c.bf16 %v621, %v619
      %v669 = vpack.c.bf16 %v626, %v624
      %v670 = vpack.c.bf16 %v631, %v629
      %v671 = vpack.c.bf16 %v636, %v634
      %v672 = vpack.c.bf16 %v641, %v639
      %v673 = vld [vmem:[%s4 + $0x20] sm:$0xf]
      %v674 = vld [vmem:[%s4 + $0x24] sm:$0xf]
      %v675 = vld [vmem:[%s4 + $0x28] sm:$0xf]
      %v676 = vld [vmem:[%s4 + $0x2c] sm:$0xf]
      %v677 = vld [vmem:[%s4 + $0x30] sm:$0xf]
      %v678 = vld [vmem:[%s4 + $0x34] sm:$0xf]
      %v679 = vld [vmem:[%s4 + $0x38] sm:$0xf]
      %v680 = vld [vmem:[%s4 + $0x3c] sm:$0xf]
      %v681 = vld [vmem:[%s4 + $0x40] sm:$0xf]
      %v682 = vld [vmem:[%s4 + $0x44] sm:$0xf]
      %v683 = vld [vmem:[%s4 + $0x48] sm:$0xf]
      %v684 = vld [vmem:[%s4 + $0x4c] sm:$0xf]
      %v685 = vld [vmem:[%s4 + $0x50] sm:$0xf]
      %v686 = vld [vmem:[%s4 + $0x54] sm:$0xf]
      %v687 = vld [vmem:[%s4 + $0x58] sm:$0xf]
      %v688 = vld [vmem:[%s4 + $0x5c] sm:$0xf]
      %v705 = vunpack.c.l.b16 %v673
      %v706 = vunpack.c.l.b16 %v674
      %v707 = vunpack.c.l.b16 %v675
      %v708 = vunpack.c.l.b16 %v676
      %v709 = vunpack.c.l.b16 %v677
      %v710 = vunpack.c.l.b16 %v678
      %v711 = vunpack.c.l.b16 %v679
      %v712 = vunpack.c.l.b16 %v680
      %v713 = vunpack.c.l.b16 %v681
      %v714 = vunpack.c.l.b16 %v682
      %v715 = vunpack.c.l.b16 %v683
      %v716 = vunpack.c.l.b16 %v684
      %v717 = vunpack.c.l.b16 %v685
      %v718 = vunpack.c.l.b16 %v686
      %v719 = vunpack.c.l.b16 %v687
      %v720 = vunpack.c.l.b16 %v688
      %v721 = vpack.c.b16 %v706, %v705
      %v722 = vpack.c.b16 %v708, %v707
      %v723 = vpack.c.b16 %v710, %v709
      %v724 = vpack.c.b16 %v712, %v711
      %v725 = vpack.c.b16 %v714, %v713
      %v726 = vpack.c.b16 %v716, %v715
      %v727 = vpack.c.b16 %v718, %v717
      %v728 = vpack.c.b16 %v720, %v719
      %737 = vmatpush.bf16.msra.mxu0 %v728
      %738 = vmatpush.bf16.msra.mxu0 %v727
      %739 = vmatpush.bf16.msra.mxu0 %v726
      %740 = vmatpush.bf16.msra.mxu0 %v725
      %741 = vmatpush.bf16.msra.mxu0 %v724
      %742 = vmatpush.bf16.msra.mxu0 %v723
      %743 = vmatpush.bf16.msra.mxu0 %v722
      %744 = vmatpush.bf16.msra.mxu0 %v721
      %745 = vmatmul.bf16.gmra.mxu0 %v665
      %v746 = vpop.f32.mrf.mxu0
      %v747 = vadd.f32 0.0, %v746
      %v748 = vpop.f32.mrf.mxu0
      %v749 = vadd.f32 0.0, %v748
      %750 = vmatmul.bf16.gmra.mxu0 %v666
      %v751 = vpop.f32.mrf.mxu0
      %v752 = vadd.f32 0.0, %v751
      %v753 = vpop.f32.mrf.mxu0
      %v754 = vadd.f32 0.0, %v753
      %755 = vmatmul.bf16.gmra.mxu0 %v667
      %v756 = vpop.f32.mrf.mxu0
      %v757 = vadd.f32 0.0, %v756
      %v758 = vpop.f32.mrf.mxu0
      %v759 = vadd.f32 0.0, %v758
      %760 = vmatmul.bf16.gmra.mxu0 %v668
      %v761 = vpop.f32.mrf.mxu0
      %v762 = vadd.f32 0.0, %v761
      %v763 = vpop.f32.mrf.mxu0
      %v764 = vadd.f32 0.0, %v763
      %765 = vmatmul.bf16.gmra.mxu0 %v669
      %v766 = vpop.f32.mrf.mxu0
      %v767 = vadd.f32 0.0, %v766
      %v768 = vpop.f32.mrf.mxu0
      %v769 = vadd.f32 0.0, %v768
      %770 = vmatmul.bf16.gmra.mxu0 %v670
      %v771 = vpop.f32.mrf.mxu0
      %v772 = vadd.f32 0.0, %v771
      %v773 = vpop.f32.mrf.mxu0
      %v774 = vadd.f32 0.0, %v773
      %775 = vmatmul.bf16.gmra.mxu0 %v671
      %v776 = vpop.f32.mrf.mxu0
      %v777 = vadd.f32 0.0, %v776
      %v778 = vpop.f32.mrf.mxu0
      %v779 = vadd.f32 0.0, %v778
      %780 = vmatmul.bf16.gmra.mxu0 %v672
      %v781 = vpop.f32.mrf.mxu0
      %v782 = vadd.f32 0.0, %v781
      %v783 = vpop.f32.mrf.mxu0
      %v784 = vadd.f32 0.0, %v783
      %785 = vdwg.mxu0
      %v802 = vunpack.c.l.b16 %v643
      %v803 = vunpack.c.l.b16 %v644
      %v804 = vunpack.c.l.b16 %v645
      %v805 = vunpack.c.l.b16 %v646
      %v806 = vunpack.c.l.b16 %v647
      %v807 = vunpack.c.l.b16 %v648
      %v808 = vunpack.c.l.b16 %v649
      %v809 = vunpack.c.l.b16 %v650
      %v810 = vunpack.c.l.b16 %v651
      %v811 = vunpack.c.l.b16 %v652
      %v812 = vunpack.c.l.b16 %v653
      %v813 = vunpack.c.l.b16 %v654
      %v814 = vunpack.c.l.b16 %v655
      %v815 = vunpack.c.l.b16 %v656
      %v816 = vunpack.c.l.b16 %v657
      %v817 = vunpack.c.l.b16 %v658
      %v818 = vpack.c.b16 %v803, %v802
      %v819 = vpack.c.b16 %v805, %v804
      %v820 = vpack.c.b16 %v807, %v806
      %v821 = vpack.c.b16 %v809, %v808
      %v822 = vpack.c.b16 %v811, %v810
      %v823 = vpack.c.b16 %v813, %v812
      %v824 = vpack.c.b16 %v815, %v814
      %v825 = vpack.c.b16 %v817, %v816
      %v832 = vunpack.c.l.b16 %v659
      %v833 = vunpack.c.l.b16 %v660
      %v834 = vunpack.c.l.b16 %v661
      %v835 = vunpack.c.l.b16 %v662
      %v836 = vunpack.c.l.b16 %v663
      %v837 = vunpack.c.l.b16 %v664
      %v838 = vpack.c.b16 %v833, %v832
      %v839 = vpack.c.b16 %v835, %v834
      %v840 = vpack.c.b16 %v837, %v836
      %vm844 = vcmask 392192
      %v846 = vsel %vm844, %v818, 0
      %v849 = vsel %vm844, %v819, 0
      %v852 = vsel %vm844, %v820, 0
      %v855 = vsel %vm844, %v821, 0
      %v858 = vsel %vm844, %v822, 0
      %v861 = vsel %vm844, %v823, 0
      %v864 = vsel %vm844, %v824, 0
      %v867 = vsel %vm844, %v825, 0
      %869 = vmatpush.bf16.msra.mxu0 0
      %870 = vmatpush.bf16.msra.mxu0 0
      %871 = vmatpush.bf16.msra.mxu0 0
      %872 = vmatpush.bf16.msra.mxu0 0
      %873 = vmatpush.bf16.msra.mxu0 0
      %874 = vmatpush.bf16.msra.mxu0 %v840
      %875 = vmatpush.bf16.msra.mxu0 %v839
      %876 = vmatpush.bf16.msra.mxu0 %v838
      %877 = vmatmul.bf16.gmra.mxu0 %v846
      %v878 = vpop.f32.mrf.mxu0
      %v879 = vadd.f32 %v747, %v878
      %v880 = vpop.f32.mrf.mxu0
      %v881 = vadd.f32 %v749, %v880
      %882 = vmatmul.bf16.gmra.mxu0 %v849
      %v883 = vpop.f32.mrf.mxu0
      %v884 = vadd.f32 %v752, %v883
      %v885 = vpop.f32.mrf.mxu0
      %v886 = vadd.f32 %v754, %v885
      %887 = vmatmul.bf16.gmra.mxu0 %v852
      %v888 = vpop.f32.mrf.mxu0
      %v889 = vadd.f32 %v757, %v888
      %v890 = vpop.f32.mrf.mxu0
      %v891 = vadd.f32 %v759, %v890
      %892 = vmatmul.bf16.gmra.mxu0 %v855
      %v893 = vpop.f32.mrf.mxu0
      %v894 = vadd.f32 %v762, %v893
      %v895 = vpop.f32.mrf.mxu0
      %v896 = vadd.f32 %v764, %v895
      %897 = vmatmul.bf16.gmra.mxu0 %v858
      %v898 = vpop.f32.mrf.mxu0
      %v899 = vadd.f32 %v767, %v898
      %v900 = vpop.f32.mrf.mxu0
      %v901 = vadd.f32 %v769, %v900
      %902 = vmatmul.bf16.gmra.mxu0 %v861
      %v903 = vpop.f32.mrf.mxu0
      %v904 = vadd.f32 %v772, %v903
      %v905 = vpop.f32.mrf.mxu0
      %v906 = vadd.f32 %v774, %v905
      %907 = vmatmul.bf16.gmra.mxu0 %v864
      %v908 = vpop.f32.mrf.mxu0
      %v909 = vadd.f32 %v777, %v908
      %v910 = vpop.f32.mrf.mxu0
      %v911 = vadd.f32 %v779, %v910
      %912 = vmatmul.bf16.gmra.mxu0 %v867
      %v913 = vpop.f32.mrf.mxu0
      %v914 = vadd.f32 %v782, %v913
      %v915 = vpop.f32.mrf.mxu0
      %v916 = vadd.f32 %v784, %v915
      %917 = vdwg.mxu0
      %v918 = vld [vmem:[%s5 + $0x1] sm:$0x1]
      %v919 = vperm.slane %v918, 0
      %v920 = vadd.f32 %v879, %v919
      %v921 = vadd.f32 %v881, %v919
      %v922 = vadd.f32 %v884, %v919
      %v923 = vadd.f32 %v886, %v919
      %v924 = vadd.f32 %v889, %v919
      %v925 = vadd.f32 %v891, %v919
      %v926 = vadd.f32 %v894, %v919
      %v927 = vadd.f32 %v896, %v919
      %v928 = vadd.f32 %v899, %v919
      %v929 = vadd.f32 %v901, %v919
      %v930 = vadd.f32 %v904, %v919
      %v931 = vadd.f32 %v906, %v919
      %v932 = vadd.f32 %v909, %v919
      %v933 = vadd.f32 %v911, %v919
      %v934 = vadd.f32 %v914, %v919
      %v935 = vadd.f32 %v916, %v919
      %v936 = vmul.f32 %v920, 0.5
      %v937 = vmul.f32 %v921, 0.5
      %v938 = vmul.f32 %v922, 0.5
      %v939 = vmul.f32 %v923, 0.5
      %v940 = vmul.f32 %v924, 0.5
      %v941 = vmul.f32 %v925, 0.5
      %v942 = vmul.f32 %v926, 0.5
      %v943 = vmul.f32 %v927, 0.5
      %v944 = vmul.f32 %v928, 0.5
      %v945 = vmul.f32 %v929, 0.5
      %v946 = vmul.f32 %v930, 0.5
      %v947 = vmul.f32 %v931, 0.5
      %v948 = vmul.f32 %v932, 0.5
      %v949 = vmul.f32 %v933, 0.5
      %v950 = vmul.f32 %v934, 0.5
      %v951 = vmul.f32 %v935, 0.5
      %v952 = vmul.f32 %v920, 0.70710677
      %v953 = vmul.f32 %v921, 0.70710677
      %v954 = vmul.f32 %v922, 0.70710677
      %v955 = vmul.f32 %v923, 0.70710677
      %v956 = vmul.f32 %v924, 0.70710677
      %v957 = vmul.f32 %v925, 0.70710677
      %v958 = vmul.f32 %v926, 0.70710677
      %v959 = vmul.f32 %v927, 0.70710677
      %v960 = vmul.f32 %v928, 0.70710677
      %v961 = vmul.f32 %v929, 0.70710677
      %v962 = vmul.f32 %v930, 0.70710677
      %v963 = vmul.f32 %v931, 0.70710677
      %v964 = vmul.f32 %v932, 0.70710677
      %v965 = vmul.f32 %v933, 0.70710677
      %v966 = vmul.f32 %v934, 0.70710677
      %v967 = vmul.f32 %v935, 0.70710677
      %v968 = vand.u32 2147483647, %v952
      %v969 = vand.u32 2147483647, %v953
      %v970 = vand.u32 2147483647, %v954
      %v971 = vand.u32 2147483647, %v955
      %v972 = vand.u32 2147483647, %v956
      %v973 = vand.u32 2147483647, %v957
      %v974 = vand.u32 2147483647, %v958
      %v975 = vand.u32 2147483647, %v959
      %v976 = vand.u32 2147483647, %v960
      %v977 = vand.u32 2147483647, %v961
      %v978 = vand.u32 2147483647, %v962
      %v979 = vand.u32 2147483647, %v963
      %v980 = vand.u32 2147483647, %v964
      %v981 = vand.u32 2147483647, %v965
      %v982 = vand.u32 2147483647, %v966
      %v983 = vand.u32 2147483647, %v967
      %v984 = vmul.f32 %v968, 0.3275911
      %v985 = vmul.f32 %v969, 0.3275911
      %v986 = vmul.f32 %v970, 0.3275911
      %v987 = vmul.f32 %v971, 0.3275911
      %v988 = vmul.f32 %v972, 0.3275911
      %v989 = vmul.f32 %v973, 0.3275911
      %v990 = vmul.f32 %v974, 0.3275911
      %v991 = vmul.f32 %v975, 0.3275911
      %v992 = vmul.f32 %v976, 0.3275911
      %v993 = vmul.f32 %v977, 0.3275911
      %v994 = vmul.f32 %v978, 0.3275911
      %v995 = vmul.f32 %v979, 0.3275911
      %v996 = vmul.f32 %v980, 0.3275911
      %v997 = vmul.f32 %v981, 0.3275911
      %v998 = vmul.f32 %v982, 0.3275911
      %v999 = vmul.f32 %v983, 0.3275911
      %v1000 = vadd.f32 %v984, 1.0
      %v1001 = vadd.f32 %v985, 1.0
      %v1002 = vadd.f32 %v986, 1.0
      %v1003 = vadd.f32 %v987, 1.0
      %v1004 = vadd.f32 %v988, 1.0
      %v1005 = vadd.f32 %v989, 1.0
      %v1006 = vadd.f32 %v990, 1.0
      %v1007 = vadd.f32 %v991, 1.0
      %v1008 = vadd.f32 %v992, 1.0
      %v1009 = vadd.f32 %v993, 1.0
      %v1010 = vadd.f32 %v994, 1.0
      %v1011 = vadd.f32 %v995, 1.0
      %v1012 = vadd.f32 %v996, 1.0
      %v1013 = vadd.f32 %v997, 1.0
      %v1014 = vadd.f32 %v998, 1.0
      %v1015 = vadd.f32 %v999, 1.0
      %v1016 = vrcp.pop %v1000
      %v1017 = vmul.f32 %v1000, %v1016
      %v1018 = vsub.f32 1.0, %v1017
      %v1019 = vmul.f32 %v1016, %v1018
      %v1020 = vadd.f32 %v1016, %v1019
      %vm1021 = vweird.f32 %v1000
      %vm1022 = vweird.f32 %v1016
      %vm1023 = vmor %vm1021, %vm1022
      %v1024 = vsel %vm1023, %v1016, %v1020
      %v1025 = vand.u32 2147483647, %v1000
      %vm1026 = vcmp.eq.f32.partialorder %v1025, 8.507059e+37
      %v1027 = vand.u32 %v1000, 2147483648
      %v1028 = vor.u32 1.1754944e-38, %v1027
      %v1029 = vsel %vm1026, %v1028, %v1024
      %v1030 = vmul.f32 1.0, %v1029
      %v1031 = vrcp.pop %v1001
      %v1032 = vmul.f32 %v1001, %v1031
      %v1033 = vsub.f32 1.0, %v1032
      %v1034 = vmul.f32 %v1031, %v1033
      %v1035 = vadd.f32 %v1031, %v1034
      %vm1036 = vweird.f32 %v1001
      %vm1037 = vweird.f32 %v1031
      %vm1038 = vmor %vm1036, %vm1037
      %v1039 = vsel %vm1038, %v1031, %v1035
      %v1040 = vand.u32 2147483647, %v1001
      %vm1041 = vcmp.eq.f32.partialorder %v1040, 8.507059e+37
      %v1042 = vand.u32 %v1001, 2147483648
      %v1043 = vor.u32 1.1754944e-38, %v1042
      %v1044 = vsel %vm1041, %v1043, %v1039
      %v1045 = vmul.f32 1.0, %v1044
      %v1046 = vrcp.pop %v1002
      %v1047 = vmul.f32 %v1002, %v1046
      %v1048 = vsub.f32 1.0, %v1047
      %v1049 = vmul.f32 %v1046, %v1048
      %v1050 = vadd.f32 %v1046, %v1049
      %vm1051 = vweird.f32 %v1002
      %vm1052 = vweird.f32 %v1046
      %vm1053 = vmor %vm1051, %vm1052
      %v1054 = vsel %vm1053, %v1046, %v1050
      %v1055 = vand.u32 2147483647, %v1002
      %vm1056 = vcmp.eq.f32.partialorder %v1055, 8.507059e+37
      %v1057 = vand.u32 %v1002, 2147483648
      %v1058 = vor.u32 1.1754944e-38, %v1057
      %v1059 = vsel %vm1056, %v1058, %v1054
      %v1060 = vmul.f32 1.0, %v1059
      %v1061 = vrcp.pop %v1003
      %v1062 = vmul.f32 %v1003, %v1061
      %v1063 = vsub.f32 1.0, %v1062
      %v1064 = vmul.f32 %v1061, %v1063
      %v1065 = vadd.f32 %v1061, %v1064
      %vm1066 = vweird.f32 %v1003
      %vm1067 = vweird.f32 %v1061
      %vm1068 = vmor %vm1066, %vm1067
      %v1069 = vsel %vm1068, %v1061, %v1065
      %v1070 = vand.u32 2147483647, %v1003
      %vm1071 = vcmp.eq.f32.partialorder %v1070, 8.507059e+37
      %v1072 = vand.u32 %v1003, 2147483648
      %v1073 = vor.u32 1.1754944e-38, %v1072
      %v1074 = vsel %vm1071, %v1073, %v1069
      %v1075 = vmul.f32 1.0, %v1074
      %v1076 = vrcp.pop %v1004
      %v1077 = vmul.f32 %v1004, %v1076
      %v1078 = vsub.f32 1.0, %v1077
      %v1079 = vmul.f32 %v1076, %v1078
      %v1080 = vadd.f32 %v1076, %v1079
      %vm1081 = vweird.f32 %v1004
      %vm1082 = vweird.f32 %v1076
      %vm1083 = vmor %vm1081, %vm1082
      %v1084 = vsel %vm1083, %v1076, %v1080
      %v1085 = vand.u32 2147483647, %v1004
      %vm1086 = vcmp.eq.f32.partialorder %v1085, 8.507059e+37
      %v1087 = vand.u32 %v1004, 2147483648
      %v1088 = vor.u32 1.1754944e-38, %v1087
      %v1089 = vsel %vm1086, %v1088, %v1084
      %v1090 = vmul.f32 1.0, %v1089
      %v1091 = vrcp.pop %v1005
      %v1092 = vmul.f32 %v1005, %v1091
      %v1093 = vsub.f32 1.0, %v1092
      %v1094 = vmul.f32 %v1091, %v1093
      %v1095 = vadd.f32 %v1091, %v1094
      %vm1096 = vweird.f32 %v1005
      %vm1097 = vweird.f32 %v1091
      %vm1098 = vmor %vm1096, %vm1097
      %v1099 = vsel %vm1098, %v1091, %v1095
      %v1100 = vand.u32 2147483647, %v1005
      %vm1101 = vcmp.eq.f32.partialorder %v1100, 8.507059e+37
      %v1102 = vand.u32 %v1005, 2147483648
      %v1103 = vor.u32 1.1754944e-38, %v1102
      %v1104 = vsel %vm1101, %v1103, %v1099
      %v1105 = vmul.f32 1.0, %v1104
      %v1106 = vrcp.pop %v1006
      %v1107 = vmul.f32 %v1006, %v1106
      %v1108 = vsub.f32 1.0, %v1107
      %v1109 = vmul.f32 %v1106, %v1108
      %v1110 = vadd.f32 %v1106, %v1109
      %vm1111 = vweird.f32 %v1006
      %vm1112 = vweird.f32 %v1106
      %vm1113 = vmor %vm1111, %vm1112
      %v1114 = vsel %vm1113, %v1106, %v1110
      %v1115 = vand.u32 2147483647, %v1006
      %vm1116 = vcmp.eq.f32.partialorder %v1115, 8.507059e+37
      %v1117 = vand.u32 %v1006, 2147483648
      %v1118 = vor.u32 1.1754944e-38, %v1117
      %v1119 = vsel %vm1116, %v1118, %v1114
      %v1120 = vmul.f32 1.0, %v1119
      %v1121 = vrcp.pop %v1007
      %v1122 = vmul.f32 %v1007, %v1121
      %v1123 = vsub.f32 1.0, %v1122
      %v1124 = vmul.f32 %v1121, %v1123
      %v1125 = vadd.f32 %v1121, %v1124
      %vm1126 = vweird.f32 %v1007
      %vm1127 = vweird.f32 %v1121
      %vm1128 = vmor %vm1126, %vm1127
      %v1129 = vsel %vm1128, %v1121, %v1125
      %v1130 = vand.u32 2147483647, %v1007
      %vm1131 = vcmp.eq.f32.partialorder %v1130, 8.507059e+37
      %v1132 = vand.u32 %v1007, 2147483648
      %v1133 = vor.u32 1.1754944e-38, %v1132
      %v1134 = vsel %vm1131, %v1133, %v1129
      %v1135 = vmul.f32 1.0, %v1134
      %v1136 = vrcp.pop %v1008
      %v1137 = vmul.f32 %v1008, %v1136
      %v1138 = vsub.f32 1.0, %v1137
      %v1139 = vmul.f32 %v1136, %v1138
      %v1140 = vadd.f32 %v1136, %v1139
      %vm1141 = vweird.f32 %v1008
      %vm1142 = vweird.f32 %v1136
      %vm1143 = vmor %vm1141, %vm1142
      %v1144 = vsel %vm1143, %v1136, %v1140
      %v1145 = vand.u32 2147483647, %v1008
      %vm1146 = vcmp.eq.f32.partialorder %v1145, 8.507059e+37
      %v1147 = vand.u32 %v1008, 2147483648
      %v1148 = vor.u32 1.1754944e-38, %v1147
      %v1149 = vsel %vm1146, %v1148, %v1144
      %v1150 = vmul.f32 1.0, %v1149
      %v1151 = vrcp.pop %v1009
      %v1152 = vmul.f32 %v1009, %v1151
      %v1153 = vsub.f32 1.0, %v1152
      %v1154 = vmul.f32 %v1151, %v1153
      %v1155 = vadd.f32 %v1151, %v1154
      %vm1156 = vweird.f32 %v1009
      %vm1157 = vweird.f32 %v1151
      %vm1158 = vmor %vm1156, %vm1157
      %v1159 = vsel %vm1158, %v1151, %v1155
      %v1160 = vand.u32 2147483647, %v1009
      %vm1161 = vcmp.eq.f32.partialorder %v1160, 8.507059e+37
      %v1162 = vand.u32 %v1009, 2147483648
      %v1163 = vor.u32 1.1754944e-38, %v1162
      %v1164 = vsel %vm1161, %v1163, %v1159
      %v1165 = vmul.f32 1.0, %v1164
      %v1166 = vrcp.pop %v1010
      %v1167 = vmul.f32 %v1010, %v1166
      %v1168 = vsub.f32 1.0, %v1167
      %v1169 = vmul.f32 %v1166, %v1168
      %v1170 = vadd.f32 %v1166, %v1169
      %vm1171 = vweird.f32 %v1010
      %vm1172 = vweird.f32 %v1166
      %vm1173 = vmor %vm1171, %vm1172
      %v1174 = vsel %vm1173, %v1166, %v1170
      %v1175 = vand.u32 2147483647, %v1010
      %vm1176 = vcmp.eq.f32.partialorder %v1175, 8.507059e+37
      %v1177 = vand.u32 %v1010, 2147483648
      %v1178 = vor.u32 1.1754944e-38, %v1177
      %v1179 = vsel %vm1176, %v1178, %v1174
      %v1180 = vmul.f32 1.0, %v1179
      %v1181 = vrcp.pop %v1011
      %v1182 = vmul.f32 %v1011, %v1181
      %v1183 = vsub.f32 1.0, %v1182
      %v1184 = vmul.f32 %v1181, %v1183
      %v1185 = vadd.f32 %v1181, %v1184
      %vm1186 = vweird.f32 %v1011
      %vm1187 = vweird.f32 %v1181
      %vm1188 = vmor %vm1186, %vm1187
      %v1189 = vsel %vm1188, %v1181, %v1185
      %v1190 = vand.u32 2147483647, %v1011
      %vm1191 = vcmp.eq.f32.partialorder %v1190, 8.507059e+37
      %v1192 = vand.u32 %v1011, 2147483648
      %v1193 = vor.u32 1.1754944e-38, %v1192
      %v1194 = vsel %vm1191, %v1193, %v1189
      %v1195 = vmul.f32 1.0, %v1194
      %v1196 = vrcp.pop %v1012
      %v1197 = vmul.f32 %v1012, %v1196
      %v1198 = vsub.f32 1.0, %v1197
      %v1199 = vmul.f32 %v1196, %v1198
      %v1200 = vadd.f32 %v1196, %v1199
      %vm1201 = vweird.f32 %v1012
      %vm1202 = vweird.f32 %v1196
      %vm1203 = vmor %vm1201, %vm1202
      %v1204 = vsel %vm1203, %v1196, %v1200
      %v1205 = vand.u32 2147483647, %v1012
      %vm1206 = vcmp.eq.f32.partialorder %v1205, 8.507059e+37
      %v1207 = vand.u32 %v1012, 2147483648
      %v1208 = vor.u32 1.1754944e-38, %v1207
      %v1209 = vsel %vm1206, %v1208, %v1204
      %v1210 = vmul.f32 1.0, %v1209
      %v1211 = vrcp.pop %v1013
      %v1212 = vmul.f32 %v1013, %v1211
      %v1213 = vsub.f32 1.0, %v1212
      %v1214 = vmul.f32 %v1211, %v1213
      %v1215 = vadd.f32 %v1211, %v1214
      %vm1216 = vweird.f32 %v1013
      %vm1217 = vweird.f32 %v1211
      %vm1218 = vmor %vm1216, %vm1217
      %v1219 = vsel %vm1218, %v1211, %v1215
      %v1220 = vand.u32 2147483647, %v1013
      %vm1221 = vcmp.eq.f32.partialorder %v1220, 8.507059e+37
      %v1222 = vand.u32 %v1013, 2147483648
      %v1223 = vor.u32 1.1754944e-38, %v1222
      %v1224 = vsel %vm1221, %v1223, %v1219
      %v1225 = vmul.f32 1.0, %v1224
      %v1226 = vrcp.pop %v1014
      %v1227 = vmul.f32 %v1014, %v1226
      %v1228 = vsub.f32 1.0, %v1227
      %v1229 = vmul.f32 %v1226, %v1228
      %v1230 = vadd.f32 %v1226, %v1229
      %vm1231 = vweird.f32 %v1014
      %vm1232 = vweird.f32 %v1226
      %vm1233 = vmor %vm1231, %vm1232
      %v1234 = vsel %vm1233, %v1226, %v1230
      %v1235 = vand.u32 2147483647, %v1014
      %vm1236 = vcmp.eq.f32.partialorder %v1235, 8.507059e+37
      %v1237 = vand.u32 %v1014, 2147483648
      %v1238 = vor.u32 1.1754944e-38, %v1237
      %v1239 = vsel %vm1236, %v1238, %v1234
      %v1240 = vmul.f32 1.0, %v1239
      %v1241 = vrcp.pop %v1015
      %v1242 = vmul.f32 %v1015, %v1241
      %v1243 = vsub.f32 1.0, %v1242
      %v1244 = vmul.f32 %v1241, %v1243
      %v1245 = vadd.f32 %v1241, %v1244
      %vm1246 = vweird.f32 %v1015
      %vm1247 = vweird.f32 %v1241
      %vm1248 = vmor %vm1246, %vm1247
      %v1249 = vsel %vm1248, %v1241, %v1245
      %v1250 = vand.u32 2147483647, %v1015
      %vm1251 = vcmp.eq.f32.partialorder %v1250, 8.507059e+37
      %v1252 = vand.u32 %v1015, 2147483648
      %v1253 = vor.u32 1.1754944e-38, %v1252
      %v1254 = vsel %vm1251, %v1253, %v1249
      %v1255 = vmul.f32 1.0, %v1254
      %v1256 = vmul.f32 %v1030, 1.0614054
      %v1257 = vmul.f32 %v1045, 1.0614054
      %v1258 = vmul.f32 %v1060, 1.0614054
      %v1259 = vmul.f32 %v1075, 1.0614054
      %v1260 = vmul.f32 %v1090, 1.0614054
      %v1261 = vmul.f32 %v1105, 1.0614054
      %v1262 = vmul.f32 %v1120, 1.0614054
      %v1263 = vmul.f32 %v1135, 1.0614054
      %v1264 = vmul.f32 %v1150, 1.0614054
      %v1265 = vmul.f32 %v1165, 1.0614054
      %v1266 = vmul.f32 %v1180, 1.0614054
      %v1267 = vmul.f32 %v1195, 1.0614054
      %v1268 = vmul.f32 %v1210, 1.0614054
      %v1269 = vmul.f32 %v1225, 1.0614054
      %v1270 = vmul.f32 %v1240, 1.0614054
      %v1271 = vmul.f32 %v1255, 1.0614054
      %v1272 = vadd.f32 %v1256, -1.4531521
      %v1273 = vadd.f32 %v1257, -1.4531521
      %v1274 = vadd.f32 %v1258, -1.4531521
      %v1275 = vadd.f32 %v1259, -1.4531521
      %v1276 = vadd.f32 %v1260, -1.4531521
      %v1277 = vadd.f32 %v1261, -1.4531521
      %v1278 = vadd.f32 %v1262, -1.4531521
      %v1279 = vadd.f32 %v1263, -1.4531521
      %v1280 = vadd.f32 %v1264, -1.4531521
      %v1281 = vadd.f32 %v1265, -1.4531521
      %v1282 = vadd.f32 %v1266, -1.4531521
      %v1283 = vadd.f32 %v1267, -1.4531521
      %v1284 = vadd.f32 %v1268, -1.4531521
      %v1285 = vadd.f32 %v1269, -1.4531521
      %v1286 = vadd.f32 %v1270, -1.4531521
      %v1287 = vadd.f32 %v1271, -1.4531521
      %v1288 = vmul.f32 %v1272, %v1030
      %v1289 = vmul.f32 %v1273, %v1045
      %v1290 = vmul.f32 %v1274, %v1060
      %v1291 = vmul.f32 %v1275, %v1075
      %v1292 = vmul.f32 %v1276, %v1090
      %v1293 = vmul.f32 %v1277, %v1105
      %v1294 = vmul.f32 %v1278, %v1120
      %v1295 = vmul.f32 %v1279, %v1135
      %v1296 = vmul.f32 %v1280, %v1150
      %v1297 = vmul.f32 %v1281, %v1165
      %v1298 = vmul.f32 %v1282, %v1180
      %v1299 = vmul.f32 %v1283, %v1195
      %v1300 = vmul.f32 %v1284, %v1210
      %v1301 = vmul.f32 %v1285, %v1225
      %v1302 = vmul.f32 %v1286, %v1240
      %v1303 = vmul.f32 %v1287, %v1255
      %v1304 = vadd.f32 %v1288, 1.4214138
      %v1305 = vadd.f32 %v1289, 1.4214138
      %v1306 = vadd.f32 %v1290, 1.4214138
      %v1307 = vadd.f32 %v1291, 1.4214138
      %v1308 = vadd.f32 %v1292, 1.4214138
      %v1309 = vadd.f32 %v1293, 1.4214138
      %v1310 = vadd.f32 %v1294, 1.4214138
      %v1311 = vadd.f32 %v1295, 1.4214138
      %v1312 = vadd.f32 %v1296, 1.4214138
      %v1313 = vadd.f32 %v1297, 1.4214138
      %v1314 = vadd.f32 %v1298, 1.4214138
      %v1315 = vadd.f32 %v1299, 1.4214138
      %v1316 = vadd.f32 %v1300, 1.4214138
      %v1317 = vadd.f32 %v1301, 1.4214138
      %v1318 = vadd.f32 %v1302, 1.4214138
      %v1319 = vadd.f32 %v1303, 1.4214138
      %v1320 = vmul.f32 %v1304, %v1030
      %v1321 = vmul.f32 %v1305, %v1045
      %v1322 = vmul.f32 %v1306, %v1060
      %v1323 = vmul.f32 %v1307, %v1075
      %v1324 = vmul.f32 %v1308, %v1090
      %v1325 = vmul.f32 %v1309, %v1105
      %v1326 = vmul.f32 %v1310, %v1120
      %v1327 = vmul.f32 %v1311, %v1135
      %v1328 = vmul.f32 %v1312, %v1150
      %v1329 = vmul.f32 %v1313, %v1165
      %v1330 = vmul.f32 %v1314, %v1180
      %v1331 = vmul.f32 %v1315, %v1195
      %v1332 = vmul.f32 %v1316, %v1210
      %v1333 = vmul.f32 %v1317, %v1225
      %v1334 = vmul.f32 %v1318, %v1240
      %v1335 = vmul.f32 %v1319, %v1255
      %v1336 = vadd.f32 %v1320, -0.28449672
      %v1337 = vadd.f32 %v1321, -0.28449672
      %v1338 = vadd.f32 %v1322, -0.28449672
      %v1339 = vadd.f32 %v1323, -0.28449672
      %v1340 = vadd.f32 %v1324, -0.28449672
      %v1341 = vadd.f32 %v1325, -0.28449672
      %v1342 = vadd.f32 %v1326, -0.28449672
      %v1343 = vadd.f32 %v1327, -0.28449672
      %v1344 = vadd.f32 %v1328, -0.28449672
      %v1345 = vadd.f32 %v1329, -0.28449672
      %v1346 = vadd.f32 %v1330, -0.28449672
      %v1347 = vadd.f32 %v1331, -0.28449672
      %v1348 = vadd.f32 %v1332, -0.28449672
      %v1349 = vadd.f32 %v1333, -0.28449672
      %v1350 = vadd.f32 %v1334, -0.28449672
      %v1351 = vadd.f32 %v1335, -0.28449672
      %v1352 = vmul.f32 %v1336, %v1030
      %v1353 = vmul.f32 %v1337, %v1045
      %v1354 = vmul.f32 %v1338, %v1060
      %v1355 = vmul.f32 %v1339, %v1075
      %v1356 = vmul.f32 %v1340, %v1090
      %v1357 = vmul.f32 %v1341, %v1105
      %v1358 = vmul.f32 %v1342, %v1120
      %v1359 = vmul.f32 %v1343, %v1135
      %v1360 = vmul.f32 %v1344, %v1150
      %v1361 = vmul.f32 %v1345, %v1165
      %v1362 = vmul.f32 %v1346, %v1180
      %v1363 = vmul.f32 %v1347, %v1195
      %v1364 = vmul.f32 %v1348, %v1210
      %v1365 = vmul.f32 %v1349, %v1225
      %v1366 = vmul.f32 %v1350, %v1240
      %v1367 = vmul.f32 %v1351, %v1255
      %v1368 = vadd.f32 %v1352, 0.2548296
      %v1369 = vadd.f32 %v1353, 0.2548296
      %v1370 = vadd.f32 %v1354, 0.2548296
      %v1371 = vadd.f32 %v1355, 0.2548296
      %v1372 = vadd.f32 %v1356, 0.2548296
      %v1373 = vadd.f32 %v1357, 0.2548296
      %v1374 = vadd.f32 %v1358, 0.2548296
      %v1375 = vadd.f32 %v1359, 0.2548296
      %v1376 = vadd.f32 %v1360, 0.2548296
      %v1377 = vadd.f32 %v1361, 0.2548296
      %v1378 = vadd.f32 %v1362, 0.2548296
      %v1379 = vadd.f32 %v1363, 0.2548296
      %v1380 = vadd.f32 %v1364, 0.2548296
      %v1381 = vadd.f32 %v1365, 0.2548296
      %v1382 = vadd.f32 %v1366, 0.2548296
      %v1383 = vadd.f32 %v1367, 0.2548296
      %v1384 = vmul.f32 %v1368, %v1030
      %v1385 = vmul.f32 %v1369, %v1045
      %v1386 = vmul.f32 %v1370, %v1060
      %v1387 = vmul.f32 %v1371, %v1075
      %v1388 = vmul.f32 %v1372, %v1090
      %v1389 = vmul.f32 %v1373, %v1105
      %v1390 = vmul.f32 %v1374, %v1120
      %v1391 = vmul.f32 %v1375, %v1135
      %v1392 = vmul.f32 %v1376, %v1150
      %v1393 = vmul.f32 %v1377, %v1165
      %v1394 = vmul.f32 %v1378, %v1180
      %v1395 = vmul.f32 %v1379, %v1195
      %v1396 = vmul.f32 %v1380, %v1210
      %v1397 = vmul.f32 %v1381, %v1225
      %v1398 = vmul.f32 %v1382, %v1240
      %v1399 = vmul.f32 %v1383, %v1255
      %v1400 = vsub.f32 0.0, %v968
      %v1401 = vsub.f32 0.0, %v969
      %v1402 = vsub.f32 0.0, %v970
      %v1403 = vsub.f32 0.0, %v971
      %v1404 = vsub.f32 0.0, %v972
      %v1405 = vsub.f32 0.0, %v973
      %v1406 = vsub.f32 0.0, %v974
      %v1407 = vsub.f32 0.0, %v975
      %v1408 = vsub.f32 0.0, %v976
      %v1409 = vsub.f32 0.0, %v977
      %v1410 = vsub.f32 0.0, %v978
      %v1411 = vsub.f32 0.0, %v979
      %v1412 = vsub.f32 0.0, %v980
      %v1413 = vsub.f32 0.0, %v981
      %v1414 = vsub.f32 0.0, %v982
      %v1415 = vsub.f32 0.0, %v983
      %v1416 = vmul.f32 %v1400, %v968
      %v1417 = vmul.f32 %v1401, %v969
      %v1418 = vmul.f32 %v1402, %v970
      %v1419 = vmul.f32 %v1403, %v971
      %v1420 = vmul.f32 %v1404, %v972
      %v1421 = vmul.f32 %v1405, %v973
      %v1422 = vmul.f32 %v1406, %v974
      %v1423 = vmul.f32 %v1407, %v975
      %v1424 = vmul.f32 %v1408, %v976
      %v1425 = vmul.f32 %v1409, %v977
      %v1426 = vmul.f32 %v1410, %v978
      %v1427 = vmul.f32 %v1411, %v979
      %v1428 = vmul.f32 %v1412, %v980
      %v1429 = vmul.f32 %v1413, %v981
      %v1430 = vmul.f32 %v1414, %v982
      %v1431 = vmul.f32 %v1415, %v983
      %v1432 = vmul.f32 %v1416, 1.442695
      %v1433 = vpow.pop %v1432
      %v1434 = vmul.f32 %v1417, 1.442695
      %v1435 = vpow.pop %v1434
      %v1436 = vmul.f32 %v1418, 1.442695
      %v1437 = vpow.pop %v1436
      %v1438 = vmul.f32 %v1419, 1.442695
      %v1439 = vpow.pop %v1438
      %v1440 = vmul.f32 %v1420, 1.442695
      %v1441 = vpow.pop %v1440
      %v1442 = vmul.f32 %v1421, 1.442695
      %v1443 = vpow.pop %v1442
      %v1444 = vmul.f32 %v1422, 1.442695
      %v1445 = vpow.pop %v1444
      %v1446 = vmul.f32 %v1423, 1.442695
      %v1447 = vpow.pop %v1446
      %v1448 = vmul.f32 %v1424, 1.442695
      %v1449 = vpow.pop %v1448
      %v1450 = vmul.f32 %v1425, 1.442695
      %v1451 = vpow.pop %v1450
      %v1452 = vmul.f32 %v1426, 1.442695
      %v1453 = vpow.pop %v1452
      %v1454 = vmul.f32 %v1427, 1.442695
      %v1455 = vpow.pop %v1454
      %v1456 = vmul.f32 %v1428, 1.442695
      %v1457 = vpow.pop %v1456
      %v1458 = vmul.f32 %v1429, 1.442695
      %v1459 = vpow.pop %v1458
      %v1460 = vmul.f32 %v1430, 1.442695
      %v1461 = vpow.pop %v1460
      %v1462 = vmul.f32 %v1431, 1.442695
      %v1463 = vpow.pop %v1462
      %v1464 = vmul.f32 %v1384, %v1433
      %v1465 = vmul.f32 %v1385, %v1435
      %v1466 = vmul.f32 %v1386, %v1437
      %v1467 = vmul.f32 %v1387, %v1439
      %v1468 = vmul.f32 %v1388, %v1441
      %v1469 = vmul.f32 %v1389, %v1443
      %v1470 = vmul.f32 %v1390, %v1445
      %v1471 = vmul.f32 %v1391, %v1447
      %v1472 = vmul.f32 %v1392, %v1449
      %v1473 = vmul.f32 %v1393, %v1451
      %v1474 = vmul.f32 %v1394, %v1453
      %v1475 = vmul.f32 %v1395, %v1455
      %v1476 = vmul.f32 %v1396, %v1457
      %v1477 = vmul.f32 %v1397, %v1459
      %v1478 = vmul.f32 %v1398, %v1461
      %v1479 = vmul.f32 %v1399, %v1463
      %v1480 = vsub.f32 1.0, %v1464
      %v1481 = vsub.f32 1.0, %v1465
      %v1482 = vsub.f32 1.0, %v1466
      %v1483 = vsub.f32 1.0, %v1467
      %v1484 = vsub.f32 1.0, %v1468
      %v1485 = vsub.f32 1.0, %v1469
      %v1486 = vsub.f32 1.0, %v1470
      %v1487 = vsub.f32 1.0, %v1471
      %v1488 = vsub.f32 1.0, %v1472
      %v1489 = vsub.f32 1.0, %v1473
      %v1490 = vsub.f32 1.0, %v1474
      %v1491 = vsub.f32 1.0, %v1475
      %v1492 = vsub.f32 1.0, %v1476
      %v1493 = vsub.f32 1.0, %v1477
      %v1494 = vsub.f32 1.0, %v1478
      %v1495 = vsub.f32 1.0, %v1479
      %vm1496 = vcmp.ge.f32.partialorder %v952, 0.0
      %vm1497 = vcmp.ge.f32.partialorder %v953, 0.0
      %vm1498 = vcmp.ge.f32.partialorder %v954, 0.0
      %vm1499 = vcmp.ge.f32.partialorder %v955, 0.0
      %vm1500 = vcmp.ge.f32.partialorder %v956, 0.0
      %vm1501 = vcmp.ge.f32.partialorder %v957, 0.0
      %vm1502 = vcmp.ge.f32.partialorder %v958, 0.0
      %vm1503 = vcmp.ge.f32.partialorder %v959, 0.0
      %vm1504 = vcmp.ge.f32.partialorder %v960, 0.0
      %vm1505 = vcmp.ge.f32.partialorder %v961, 0.0
      %vm1506 = vcmp.ge.f32.partialorder %v962, 0.0
      %vm1507 = vcmp.ge.f32.partialorder %v963, 0.0
      %vm1508 = vcmp.ge.f32.partialorder %v964, 0.0
      %vm1509 = vcmp.ge.f32.partialorder %v965, 0.0
      %vm1510 = vcmp.ge.f32.partialorder %v966, 0.0
      %vm1511 = vcmp.ge.f32.partialorder %v967, 0.0
      %v1512 = vsub.f32 0.0, %v1480
      %v1513 = vsub.f32 0.0, %v1481
      %v1514 = vsub.f32 0.0, %v1482
      %v1515 = vsub.f32 0.0, %v1483
      %v1516 = vsub.f32 0.0, %v1484
      %v1517 = vsub.f32 0.0, %v1485
      %v1518 = vsub.f32 0.0, %v1486
      %v1519 = vsub.f32 0.0, %v1487
      %v1520 = vsub.f32 0.0, %v1488
      %v1521 = vsub.f32 0.0, %v1489
      %v1522 = vsub.f32 0.0, %v1490
      %v1523 = vsub.f32 0.0, %v1491
      %v1524 = vsub.f32 0.0, %v1492
      %v1525 = vsub.f32 0.0, %v1493
      %v1526 = vsub.f32 0.0, %v1494
      %v1527 = vsub.f32 0.0, %v1495
      %v1528 = vsel %vm1496, %v1480, %v1512
      %v1529 = vsel %vm1497, %v1481, %v1513
      %v1530 = vsel %vm1498, %v1482, %v1514
      %v1531 = vsel %vm1499, %v1483, %v1515
      %v1532 = vsel %vm1500, %v1484, %v1516
      %v1533 = vsel %vm1501, %v1485, %v1517
      %v1534 = vsel %vm1502, %v1486, %v1518
      %v1535 = vsel %vm1503, %v1487, %v1519
      %v1536 = vsel %vm1504, %v1488, %v1520
      %v1537 = vsel %vm1505, %v1489, %v1521
      %v1538 = vsel %vm1506, %v1490, %v1522
      %v1539 = vsel %vm1507, %v1491, %v1523
      %v1540 = vsel %vm1508, %v1492, %v1524
      %v1541 = vsel %vm1509, %v1493, %v1525
      %v1542 = vsel %vm1510, %v1494, %v1526
      %v1543 = vsel %vm1511, %v1495, %v1527
      %v1544 = vadd.f32 %v1528, 1.0
      %v1545 = vadd.f32 %v1529, 1.0
      %v1546 = vadd.f32 %v1530, 1.0
      %v1547 = vadd.f32 %v1531, 1.0
      %v1548 = vadd.f32 %v1532, 1.0
      %v1549 = vadd.f32 %v1533, 1.0
      %v1550 = vadd.f32 %v1534, 1.0
      %v1551 = vadd.f32 %v1535, 1.0
      %v1552 = vadd.f32 %v1536, 1.0
      %v1553 = vadd.f32 %v1537, 1.0
      %v1554 = vadd.f32 %v1538, 1.0
      %v1555 = vadd.f32 %v1539, 1.0
      %v1556 = vadd.f32 %v1540, 1.0
      %v1557 = vadd.f32 %v1541, 1.0
      %v1558 = vadd.f32 %v1542, 1.0
      %v1559 = vadd.f32 %v1543, 1.0
      %v1560 = vmul.f32 %v936, %v1544
      %v1561 = vmul.f32 %v937, %v1545
      %v1562 = vmul.f32 %v938, %v1546
      %v1563 = vmul.f32 %v939, %v1547
      %v1564 = vmul.f32 %v940, %v1548
      %v1565 = vmul.f32 %v941, %v1549
      %v1566 = vmul.f32 %v942, %v1550
      %v1567 = vmul.f32 %v943, %v1551
      %v1568 = vmul.f32 %v944, %v1552
      %v1569 = vmul.f32 %v945, %v1553
      %v1570 = vmul.f32 %v946, %v1554
      %v1571 = vmul.f32 %v947, %v1555
      %v1572 = vmul.f32 %v948, %v1556
      %v1573 = vmul.f32 %v949, %v1557
      %v1574 = vmul.f32 %v950, %v1558
      %v1575 = vmul.f32 %v951, %v1559
      %v1576 = vpack.c.bf16 %v1561, %v1560
      %v1577 = vpack.c.bf16 %v1563, %v1562
      %v1578 = vpack.c.bf16 %v1565, %v1564
      %v1579 = vpack.c.bf16 %v1567, %v1566
      %v1580 = vpack.c.bf16 %v1569, %v1568
      %v1581 = vpack.c.bf16 %v1571, %v1570
      %v1582 = vpack.c.bf16 %v1573, %v1572
      %v1583 = vpack.c.bf16 %v1575, %v1574
      %v1584 = vld [vmem:[%s4 + $0x60] sm:$0xf]
      %v1585 = vld [vmem:[%s4 + $0x64] sm:$0xf]
      %v1586 = vld [vmem:[%s4 + $0x68] sm:$0xf]
      %v1587 = vld [vmem:[%s4 + $0x6c] sm:$0xf]
      %v1588 = vld [vmem:[%s4 + $0x70] sm:$0xf]
      %v1589 = vld [vmem:[%s4 + $0x74] sm:$0xf]
      %v1590 = vld [vmem:[%s4 + $0x78] sm:$0xf]
      %v1591 = vld [vmem:[%s4 + $0x7c] sm:$0xf]
      %v1592 = vld [vmem:[%s4 + $0x80] sm:$0xf]
      %v1593 = vld [vmem:[%s4 + $0x84] sm:$0xf]
      %v1594 = vld [vmem:[%s4 + $0x88] sm:$0xf]
      %v1595 = vld [vmem:[%s4 + $0x8c] sm:$0xf]
      %v1596 = vld [vmem:[%s4 + $0x90] sm:$0xf]
      %v1597 = vld [vmem:[%s4 + $0x94] sm:$0xf]
      %v1598 = vld [vmem:[%s4 + $0x98] sm:$0xf]
      %v1599 = vld [vmem:[%s4 + $0x9c] sm:$0xf]
      %v1600 = vld [vmem:[%s5 + $0x2] sm:$0x1]
      %v1601 = vperm.slane %v1600, 0
      %v1618 = vunpack.c.l.b16 %v1584
      %v1619 = vunpack.c.l.b16 %v1585
      %v1620 = vunpack.c.l.b16 %v1586
      %v1621 = vunpack.c.l.b16 %v1587
      %v1622 = vunpack.c.l.b16 %v1588
      %v1623 = vunpack.c.l.b16 %v1589
      %v1624 = vunpack.c.l.b16 %v1590
      %v1625 = vunpack.c.l.b16 %v1591
      %v1626 = vunpack.c.l.b16 %v1592
      %v1627 = vunpack.c.l.b16 %v1593
      %v1628 = vunpack.c.l.b16 %v1594
      %v1629 = vunpack.c.l.b16 %v1595
      %v1630 = vunpack.c.l.b16 %v1596
      %v1631 = vunpack.c.l.b16 %v1597
      %v1632 = vunpack.c.l.b16 %v1598
      %v1633 = vunpack.c.l.b16 %v1599
      %v1634 = vpack.c.b16 %v1619, %v1618
      %v1635 = vpack.c.b16 %v1621, %v1620
      %v1636 = vpack.c.b16 %v1623, %v1622
      %v1637 = vpack.c.b16 %v1625, %v1624
      %v1638 = vpack.c.b16 %v1627, %v1626
      %v1639 = vpack.c.b16 %v1629, %v1628
      %v1640 = vpack.c.b16 %v1631, %v1630
      %v1641 = vpack.c.b16 %v1633, %v1632
      %1650 = vmatpush.bf16.msra.mxu0 %v1641
      %1651 = vmatpush.bf16.msra.mxu0 %v1640
      %1652 = vmatpush.bf16.msra.mxu0 %v1639
      %1653 = vmatpush.bf16.msra.mxu0 %v1638
      %1654 = vmatpush.bf16.msra.mxu0 %v1637
      %1655 = vmatpush.bf16.msra.mxu0 %v1636
      %1656 = vmatpush.bf16.msra.mxu0 %v1635
      %1657 = vmatpush.bf16.msra.mxu0 %v1634
      %1658 = vmatmul.bf16.gmra.mxu0 %v1576
      %v1659 = vpop.f32.mrf.mxu0
      %v1660 = vadd.f32 %v1601, %v1659
      %v1661 = vpop.f32.mrf.mxu0
      %v1662 = vadd.f32 %v1601, %v1661
      %1663 = vmatmul.bf16.gmra.mxu0 %v1577
      %v1664 = vpop.f32.mrf.mxu0
      %v1665 = vadd.f32 %v1601, %v1664
      %v1666 = vpop.f32.mrf.mxu0
      %v1667 = vadd.f32 %v1601, %v1666
      %1668 = vmatmul.bf16.gmra.mxu0 %v1578
      %v1669 = vpop.f32.mrf.mxu0
      %v1670 = vadd.f32 %v1601, %v1669
      %v1671 = vpop.f32.mrf.mxu0
      %v1672 = vadd.f32 %v1601, %v1671
      %1673 = vmatmul.bf16.gmra.mxu0 %v1579
      %v1674 = vpop.f32.mrf.mxu0
      %v1675 = vadd.f32 %v1601, %v1674
      %v1676 = vpop.f32.mrf.mxu0
      %v1677 = vadd.f32 %v1601, %v1676
      %1678 = vmatmul.bf16.gmra.mxu0 %v1580
      %v1679 = vpop.f32.mrf.mxu0
      %v1680 = vadd.f32 %v1601, %v1679
      %v1681 = vpop.f32.mrf.mxu0
      %v1682 = vadd.f32 %v1601, %v1681
      %1683 = vmatmul.bf16.gmra.mxu0 %v1581
      %v1684 = vpop.f32.mrf.mxu0
      %v1685 = vadd.f32 %v1601, %v1684
      %v1686 = vpop.f32.mrf.mxu0
      %v1687 = vadd.f32 %v1601, %v1686
      %1688 = vmatmul.bf16.gmra.mxu0 %v1582
      %v1689 = vpop.f32.mrf.mxu0
      %v1690 = vadd.f32 %v1601, %v1689
      %v1691 = vpop.f32.mrf.mxu0
      %v1692 = vadd.f32 %v1601, %v1691
      %1693 = vmatmul.bf16.gmra.mxu0 %v1583
      %v1694 = vpop.f32.mrf.mxu0
      %v1695 = vadd.f32 %v1601, %v1694
      %v1696 = vpop.f32.mrf.mxu0
      %v1697 = vadd.f32 %v1601, %v1696
      %1698 = vdwg.mxu0
      %v1699 = vmul.f32 %v1660, 0.5
      %v1700 = vmul.f32 %v1662, 0.5
      %v1701 = vmul.f32 %v1665, 0.5
      %v1702 = vmul.f32 %v1667, 0.5
      %v1703 = vmul.f32 %v1670, 0.5
      %v1704 = vmul.f32 %v1672, 0.5
      %v1705 = vmul.f32 %v1675, 0.5
      %v1706 = vmul.f32 %v1677, 0.5
      %v1707 = vmul.f32 %v1680, 0.5
      %v1708 = vmul.f32 %v1682, 0.5
      %v1709 = vmul.f32 %v1685, 0.5
      %v1710 = vmul.f32 %v1687, 0.5
      %v1711 = vmul.f32 %v1690, 0.5
      %v1712 = vmul.f32 %v1692, 0.5
      %v1713 = vmul.f32 %v1695, 0.5
      %v1714 = vmul.f32 %v1697, 0.5
      %v1715 = vmul.f32 %v1660, 0.70710677
      %v1716 = vmul.f32 %v1662, 0.70710677
      %v1717 = vmul.f32 %v1665, 0.70710677
      %v1718 = vmul.f32 %v1667, 0.70710677
      %v1719 = vmul.f32 %v1670, 0.70710677
      %v1720 = vmul.f32 %v1672, 0.70710677
      %v1721 = vmul.f32 %v1675, 0.70710677
      %v1722 = vmul.f32 %v1677, 0.70710677
      %v1723 = vmul.f32 %v1680, 0.70710677
      %v1724 = vmul.f32 %v1682, 0.70710677
      %v1725 = vmul.f32 %v1685, 0.70710677
      %v1726 = vmul.f32 %v1687, 0.70710677
      %v1727 = vmul.f32 %v1690, 0.70710677
      %v1728 = vmul.f32 %v1692, 0.70710677
      %v1729 = vmul.f32 %v1695, 0.70710677
      %v1730 = vmul.f32 %v1697, 0.70710677
      %v1731 = vand.u32 2147483647, %v1715
      %v1732 = vand.u32 2147483647, %v1716
      %v1733 = vand.u32 2147483647, %v1717
      %v1734 = vand.u32 2147483647, %v1718
      %v1735 = vand.u32 2147483647, %v1719
      %v1736 = vand.u32 2147483647, %v1720
      %v1737 = vand.u32 2147483647, %v1721
      %v1738 = vand.u32 2147483647, %v1722
      %v1739 = vand.u32 2147483647, %v1723
      %v1740 = vand.u32 2147483647, %v1724
      %v1741 = vand.u32 2147483647, %v1725
      %v1742 = vand.u32 2147483647, %v1726
      %v1743 = vand.u32 2147483647, %v1727
      %v1744 = vand.u32 2147483647, %v1728
      %v1745 = vand.u32 2147483647, %v1729
      %v1746 = vand.u32 2147483647, %v1730
      %v1747 = vmul.f32 %v1731, 0.3275911
      %v1748 = vmul.f32 %v1732, 0.3275911
      %v1749 = vmul.f32 %v1733, 0.3275911
      %v1750 = vmul.f32 %v1734, 0.3275911
      %v1751 = vmul.f32 %v1735, 0.3275911
      %v1752 = vmul.f32 %v1736, 0.3275911
      %v1753 = vmul.f32 %v1737, 0.3275911
      %v1754 = vmul.f32 %v1738, 0.3275911
      %v1755 = vmul.f32 %v1739, 0.3275911
      %v1756 = vmul.f32 %v1740, 0.3275911
      %v1757 = vmul.f32 %v1741, 0.3275911
      %v1758 = vmul.f32 %v1742, 0.3275911
      %v1759 = vmul.f32 %v1743, 0.3275911
      %v1760 = vmul.f32 %v1744, 0.3275911
      %v1761 = vmul.f32 %v1745, 0.3275911
      %v1762 = vmul.f32 %v1746, 0.3275911
      %v1763 = vadd.f32 %v1747, 1.0
      %v1764 = vadd.f32 %v1748, 1.0
      %v1765 = vadd.f32 %v1749, 1.0
      %v1766 = vadd.f32 %v1750, 1.0
      %v1767 = vadd.f32 %v1751, 1.0
      %v1768 = vadd.f32 %v1752, 1.0
      %v1769 = vadd.f32 %v1753, 1.0
      %v1770 = vadd.f32 %v1754, 1.0
      %v1771 = vadd.f32 %v1755, 1.0
      %v1772 = vadd.f32 %v1756, 1.0
      %v1773 = vadd.f32 %v1757, 1.0
      %v1774 = vadd.f32 %v1758, 1.0
      %v1775 = vadd.f32 %v1759, 1.0
      %v1776 = vadd.f32 %v1760, 1.0
      %v1777 = vadd.f32 %v1761, 1.0
      %v1778 = vadd.f32 %v1762, 1.0
      %v1779 = vrcp.pop %v1763
      %v1780 = vmul.f32 %v1763, %v1779
      %v1781 = vsub.f32 1.0, %v1780
      %v1782 = vmul.f32 %v1779, %v1781
      %v1783 = vadd.f32 %v1779, %v1782
      %vm1784 = vweird.f32 %v1763
      %vm1785 = vweird.f32 %v1779
      %vm1786 = vmor %vm1784, %vm1785
      %v1787 = vsel %vm1786, %v1779, %v1783
      %v1788 = vand.u32 2147483647, %v1763
      %vm1789 = vcmp.eq.f32.partialorder %v1788, 8.507059e+37
      %v1790 = vand.u32 %v1763, 2147483648
      %v1791 = vor.u32 1.1754944e-38, %v1790
      %v1792 = vsel %vm1789, %v1791, %v1787
      %v1793 = vmul.f32 1.0, %v1792
      %v1794 = vrcp.pop %v1764
      %v1795 = vmul.f32 %v1764, %v1794
      %v1796 = vsub.f32 1.0, %v1795
      %v1797 = vmul.f32 %v1794, %v1796
      %v1798 = vadd.f32 %v1794, %v1797
      %vm1799 = vweird.f32 %v1764
      %vm1800 = vweird.f32 %v1794
      %vm1801 = vmor %vm1799, %vm1800
      %v1802 = vsel %vm1801, %v1794, %v1798
      %v1803 = vand.u32 2147483647, %v1764
      %vm1804 = vcmp.eq.f32.partialorder %v1803, 8.507059e+37
      %v1805 = vand.u32 %v1764, 2147483648
      %v1806 = vor.u32 1.1754944e-38, %v1805
      %v1807 = vsel %vm1804, %v1806, %v1802
      %v1808 = vmul.f32 1.0, %v1807
      %v1809 = vrcp.pop %v1765
      %v1810 = vmul.f32 %v1765, %v1809
      %v1811 = vsub.f32 1.0, %v1810
      %v1812 = vmul.f32 %v1809, %v1811
      %v1813 = vadd.f32 %v1809, %v1812
      %vm1814 = vweird.f32 %v1765
      %vm1815 = vweird.f32 %v1809
      %vm1816 = vmor %vm1814, %vm1815
      %v1817 = vsel %vm1816, %v1809, %v1813
      %v1818 = vand.u32 2147483647, %v1765
      %vm1819 = vcmp.eq.f32.partialorder %v1818, 8.507059e+37
      %v1820 = vand.u32 %v1765, 2147483648
      %v1821 = vor.u32 1.1754944e-38, %v1820
      %v1822 = vsel %vm1819, %v1821, %v1817
      %v1823 = vmul.f32 1.0, %v1822
      %v1824 = vrcp.pop %v1766
      %v1825 = vmul.f32 %v1766, %v1824
      %v1826 = vsub.f32 1.0, %v1825
      %v1827 = vmul.f32 %v1824, %v1826
      %v1828 = vadd.f32 %v1824, %v1827
      %vm1829 = vweird.f32 %v1766
      %vm1830 = vweird.f32 %v1824
      %vm1831 = vmor %vm1829, %vm1830
      %v1832 = vsel %vm1831, %v1824, %v1828
      %v1833 = vand.u32 2147483647, %v1766
      %vm1834 = vcmp.eq.f32.partialorder %v1833, 8.507059e+37
      %v1835 = vand.u32 %v1766, 2147483648
      %v1836 = vor.u32 1.1754944e-38, %v1835
      %v1837 = vsel %vm1834, %v1836, %v1832
      %v1838 = vmul.f32 1.0, %v1837
      %v1839 = vrcp.pop %v1767
      %v1840 = vmul.f32 %v1767, %v1839
      %v1841 = vsub.f32 1.0, %v1840
      %v1842 = vmul.f32 %v1839, %v1841
      %v1843 = vadd.f32 %v1839, %v1842
      %vm1844 = vweird.f32 %v1767
      %vm1845 = vweird.f32 %v1839
      %vm1846 = vmor %vm1844, %vm1845
      %v1847 = vsel %vm1846, %v1839, %v1843
      %v1848 = vand.u32 2147483647, %v1767
      %vm1849 = vcmp.eq.f32.partialorder %v1848, 8.507059e+37
      %v1850 = vand.u32 %v1767, 2147483648
      %v1851 = vor.u32 1.1754944e-38, %v1850
      %v1852 = vsel %vm1849, %v1851, %v1847
      %v1853 = vmul.f32 1.0, %v1852
      %v1854 = vrcp.pop %v1768
      %v1855 = vmul.f32 %v1768, %v1854
      %v1856 = vsub.f32 1.0, %v1855
      %v1857 = vmul.f32 %v1854, %v1856
      %v1858 = vadd.f32 %v1854, %v1857
      %vm1859 = vweird.f32 %v1768
      %vm1860 = vweird.f32 %v1854
      %vm1861 = vmor %vm1859, %vm1860
      %v1862 = vsel %vm1861, %v1854, %v1858
      %v1863 = vand.u32 2147483647, %v1768
      %vm1864 = vcmp.eq.f32.partialorder %v1863, 8.507059e+37
      %v1865 = vand.u32 %v1768, 2147483648
      %v1866 = vor.u32 1.1754944e-38, %v1865
      %v1867 = vsel %vm1864, %v1866, %v1862
      %v1868 = vmul.f32 1.0, %v1867
      %v1869 = vrcp.pop %v1769
      %v1870 = vmul.f32 %v1769, %v1869
      %v1871 = vsub.f32 1.0, %v1870
      %v1872 = vmul.f32 %v1869, %v1871
      %v1873 = vadd.f32 %v1869, %v1872
      %vm1874 = vweird.f32 %v1769
      %vm1875 = vweird.f32 %v1869
      %vm1876 = vmor %vm1874, %vm1875
      %v1877 = vsel %vm1876, %v1869, %v1873
      %v1878 = vand.u32 2147483647, %v1769
      %vm1879 = vcmp.eq.f32.partialorder %v1878, 8.507059e+37
      %v1880 = vand.u32 %v1769, 2147483648
      %v1881 = vor.u32 1.1754944e-38, %v1880
      %v1882 = vsel %vm1879, %v1881, %v1877
      %v1883 = vmul.f32 1.0, %v1882
      %v1884 = vrcp.pop %v1770
      %v1885 = vmul.f32 %v1770, %v1884
      %v1886 = vsub.f32 1.0, %v1885
      %v1887 = vmul.f32 %v1884, %v1886
      %v1888 = vadd.f32 %v1884, %v1887
      %vm1889 = vweird.f32 %v1770
      %vm1890 = vweird.f32 %v1884
      %vm1891 = vmor %vm1889, %vm1890
      %v1892 = vsel %vm1891, %v1884, %v1888
      %v1893 = vand.u32 2147483647, %v1770
      %vm1894 = vcmp.eq.f32.partialorder %v1893, 8.507059e+37
      %v1895 = vand.u32 %v1770, 2147483648
      %v1896 = vor.u32 1.1754944e-38, %v1895
      %v1897 = vsel %vm1894, %v1896, %v1892
      %v1898 = vmul.f32 1.0, %v1897
      %v1899 = vrcp.pop %v1771
      %v1900 = vmul.f32 %v1771, %v1899
      %v1901 = vsub.f32 1.0, %v1900
      %v1902 = vmul.f32 %v1899, %v1901
      %v1903 = vadd.f32 %v1899, %v1902
      %vm1904 = vweird.f32 %v1771
      %vm1905 = vweird.f32 %v1899
      %vm1906 = vmor %vm1904, %vm1905
      %v1907 = vsel %vm1906, %v1899, %v1903
      %v1908 = vand.u32 2147483647, %v1771
      %vm1909 = vcmp.eq.f32.partialorder %v1908, 8.507059e+37
      %v1910 = vand.u32 %v1771, 2147483648
      %v1911 = vor.u32 1.1754944e-38, %v1910
      %v1912 = vsel %vm1909, %v1911, %v1907
      %v1913 = vmul.f32 1.0, %v1912
      %v1914 = vrcp.pop %v1772
      %v1915 = vmul.f32 %v1772, %v1914
      %v1916 = vsub.f32 1.0, %v1915
      %v1917 = vmul.f32 %v1914, %v1916
      %v1918 = vadd.f32 %v1914, %v1917
      %vm1919 = vweird.f32 %v1772
      %vm1920 = vweird.f32 %v1914
      %vm1921 = vmor %vm1919, %vm1920
      %v1922 = vsel %vm1921, %v1914, %v1918
      %v1923 = vand.u32 2147483647, %v1772
      %vm1924 = vcmp.eq.f32.partialorder %v1923, 8.507059e+37
      %v1925 = vand.u32 %v1772, 2147483648
      %v1926 = vor.u32 1.1754944e-38, %v1925
      %v1927 = vsel %vm1924, %v1926, %v1922
      %v1928 = vmul.f32 1.0, %v1927
      %v1929 = vrcp.pop %v1773
      %v1930 = vmul.f32 %v1773, %v1929
      %v1931 = vsub.f32 1.0, %v1930
      %v1932 = vmul.f32 %v1929, %v1931
      %v1933 = vadd.f32 %v1929, %v1932
      %vm1934 = vweird.f32 %v1773
      %vm1935 = vweird.f32 %v1929
      %vm1936 = vmor %vm1934, %vm1935
      %v1937 = vsel %vm1936, %v1929, %v1933
      %v1938 = vand.u32 2147483647, %v1773
      %vm1939 = vcmp.eq.f32.partialorder %v1938, 8.507059e+37
      %v1940 = vand.u32 %v1773, 2147483648
      %v1941 = vor.u32 1.1754944e-38, %v1940
      %v1942 = vsel %vm1939, %v1941, %v1937
      %v1943 = vmul.f32 1.0, %v1942
      %v1944 = vrcp.pop %v1774
      %v1945 = vmul.f32 %v1774, %v1944
      %v1946 = vsub.f32 1.0, %v1945
      %v1947 = vmul.f32 %v1944, %v1946
      %v1948 = vadd.f32 %v1944, %v1947
      %vm1949 = vweird.f32 %v1774
      %vm1950 = vweird.f32 %v1944
      %vm1951 = vmor %vm1949, %vm1950
      %v1952 = vsel %vm1951, %v1944, %v1948
      %v1953 = vand.u32 2147483647, %v1774
      %vm1954 = vcmp.eq.f32.partialorder %v1953, 8.507059e+37
      %v1955 = vand.u32 %v1774, 2147483648
      %v1956 = vor.u32 1.1754944e-38, %v1955
      %v1957 = vsel %vm1954, %v1956, %v1952
      %v1958 = vmul.f32 1.0, %v1957
      %v1959 = vrcp.pop %v1775
      %v1960 = vmul.f32 %v1775, %v1959
      %v1961 = vsub.f32 1.0, %v1960
      %v1962 = vmul.f32 %v1959, %v1961
      %v1963 = vadd.f32 %v1959, %v1962
      %vm1964 = vweird.f32 %v1775
      %vm1965 = vweird.f32 %v1959
      %vm1966 = vmor %vm1964, %vm1965
      %v1967 = vsel %vm1966, %v1959, %v1963
      %v1968 = vand.u32 2147483647, %v1775
      %vm1969 = vcmp.eq.f32.partialorder %v1968, 8.507059e+37
      %v1970 = vand.u32 %v1775, 2147483648
      %v1971 = vor.u32 1.1754944e-38, %v1970
      %v1972 = vsel %vm1969, %v1971, %v1967
      %v1973 = vmul.f32 1.0, %v1972
      %v1974 = vrcp.pop %v1776
      %v1975 = vmul.f32 %v1776, %v1974
      %v1976 = vsub.f32 1.0, %v1975
      %v1977 = vmul.f32 %v1974, %v1976
      %v1978 = vadd.f32 %v1974, %v1977
      %vm1979 = vweird.f32 %v1776
      %vm1980 = vweird.f32 %v1974
      %vm1981 = vmor %vm1979, %vm1980
      %v1982 = vsel %vm1981, %v1974, %v1978
      %v1983 = vand.u32 2147483647, %v1776
      %vm1984 = vcmp.eq.f32.partialorder %v1983, 8.507059e+37
      %v1985 = vand.u32 %v1776, 2147483648
      %v1986 = vor.u32 1.1754944e-38, %v1985
      %v1987 = vsel %vm1984, %v1986, %v1982
      %v1988 = vmul.f32 1.0, %v1987
      %v1989 = vrcp.pop %v1777
      %v1990 = vmul.f32 %v1777, %v1989
      %v1991 = vsub.f32 1.0, %v1990
      %v1992 = vmul.f32 %v1989, %v1991
      %v1993 = vadd.f32 %v1989, %v1992
      %vm1994 = vweird.f32 %v1777
      %vm1995 = vweird.f32 %v1989
      %vm1996 = vmor %vm1994, %vm1995
      %v1997 = vsel %vm1996, %v1989, %v1993
      %v1998 = vand.u32 2147483647, %v1777
      %vm1999 = vcmp.eq.f32.partialorder %v1998, 8.507059e+37
      %v2000 = vand.u32 %v1777, 2147483648
      %v2001 = vor.u32 1.1754944e-38, %v2000
      %v2002 = vsel %vm1999, %v2001, %v1997
      %v2003 = vmul.f32 1.0, %v2002
      %v2004 = vrcp.pop %v1778
      %v2005 = vmul.f32 %v1778, %v2004
      %v2006 = vsub.f32 1.0, %v2005
      %v2007 = vmul.f32 %v2004, %v2006
      %v2008 = vadd.f32 %v2004, %v2007
      %vm2009 = vweird.f32 %v1778
      %vm2010 = vweird.f32 %v2004
      %vm2011 = vmor %vm2009, %vm2010
      %v2012 = vsel %vm2011, %v2004, %v2008
      %v2013 = vand.u32 2147483647, %v1778
      %vm2014 = vcmp.eq.f32.partialorder %v2013, 8.507059e+37
      %v2015 = vand.u32 %v1778, 2147483648
      %v2016 = vor.u32 1.1754944e-38, %v2015
      %v2017 = vsel %vm2014, %v2016, %v2012
      %v2018 = vmul.f32 1.0, %v2017
      %v2019 = vmul.f32 %v1793, 1.0614054
      %v2020 = vmul.f32 %v1808, 1.0614054
      %v2021 = vmul.f32 %v1823, 1.0614054
      %v2022 = vmul.f32 %v1838, 1.0614054
      %v2023 = vmul.f32 %v1853, 1.0614054
      %v2024 = vmul.f32 %v1868, 1.0614054
      %v2025 = vmul.f32 %v1883, 1.0614054
      %v2026 = vmul.f32 %v1898, 1.0614054
      %v2027 = vmul.f32 %v1913, 1.0614054
      %v2028 = vmul.f32 %v1928, 1.0614054
      %v2029 = vmul.f32 %v1943, 1.0614054
      %v2030 = vmul.f32 %v1958, 1.0614054
      %v2031 = vmul.f32 %v1973, 1.0614054
      %v2032 = vmul.f32 %v1988, 1.0614054
      %v2033 = vmul.f32 %v2003, 1.0614054
      %v2034 = vmul.f32 %v2018, 1.0614054
      %v2035 = vadd.f32 %v2019, -1.4531521
      %v2036 = vadd.f32 %v2020, -1.4531521
      %v2037 = vadd.f32 %v2021, -1.4531521
      %v2038 = vadd.f32 %v2022, -1.4531521
      %v2039 = vadd.f32 %v2023, -1.4531521
      %v2040 = vadd.f32 %v2024, -1.4531521
      %v2041 = vadd.f32 %v2025, -1.4531521
      %v2042 = vadd.f32 %v2026, -1.4531521
      %v2043 = vadd.f32 %v2027, -1.4531521
      %v2044 = vadd.f32 %v2028, -1.4531521
      %v2045 = vadd.f32 %v2029, -1.4531521
      %v2046 = vadd.f32 %v2030, -1.4531521
      %v2047 = vadd.f32 %v2031, -1.4531521
      %v2048 = vadd.f32 %v2032, -1.4531521
      %v2049 = vadd.f32 %v2033, -1.4531521
      %v2050 = vadd.f32 %v2034, -1.4531521
      %v2051 = vmul.f32 %v2035, %v1793
      %v2052 = vmul.f32 %v2036, %v1808
      %v2053 = vmul.f32 %v2037, %v1823
      %v2054 = vmul.f32 %v2038, %v1838
      %v2055 = vmul.f32 %v2039, %v1853
      %v2056 = vmul.f32 %v2040, %v1868
      %v2057 = vmul.f32 %v2041, %v1883
      %v2058 = vmul.f32 %v2042, %v1898
      %v2059 = vmul.f32 %v2043, %v1913
      %v2060 = vmul.f32 %v2044, %v1928
      %v2061 = vmul.f32 %v2045, %v1943
      %v2062 = vmul.f32 %v2046, %v1958
      %v2063 = vmul.f32 %v2047, %v1973
      %v2064 = vmul.f32 %v2048, %v1988
      %v2065 = vmul.f32 %v2049, %v2003
      %v2066 = vmul.f32 %v2050, %v2018
      %v2067 = vadd.f32 %v2051, 1.4214138
      %v2068 = vadd.f32 %v2052, 1.4214138
      %v2069 = vadd.f32 %v2053, 1.4214138
      %v2070 = vadd.f32 %v2054, 1.4214138
      %v2071 = vadd.f32 %v2055, 1.4214138
      %v2072 = vadd.f32 %v2056, 1.4214138
      %v2073 = vadd.f32 %v2057, 1.4214138
      %v2074 = vadd.f32 %v2058, 1.4214138
      %v2075 = vadd.f32 %v2059, 1.4214138
      %v2076 = vadd.f32 %v2060, 1.4214138
      %v2077 = vadd.f32 %v2061, 1.4214138
      %v2078 = vadd.f32 %v2062, 1.4214138
      %v2079 = vadd.f32 %v2063, 1.4214138
      %v2080 = vadd.f32 %v2064, 1.4214138
      %v2081 = vadd.f32 %v2065, 1.4214138
      %v2082 = vadd.f32 %v2066, 1.4214138
      %v2083 = vmul.f32 %v2067, %v1793
      %v2084 = vmul.f32 %v2068, %v1808
      %v2085 = vmul.f32 %v2069, %v1823
      %v2086 = vmul.f32 %v2070, %v1838
      %v2087 = vmul.f32 %v2071, %v1853
      %v2088 = vmul.f32 %v2072, %v1868
      %v2089 = vmul.f32 %v2073, %v1883
      %v2090 = vmul.f32 %v2074, %v1898
      %v2091 = vmul.f32 %v2075, %v1913
      %v2092 = vmul.f32 %v2076, %v1928
      %v2093 = vmul.f32 %v2077, %v1943
      %v2094 = vmul.f32 %v2078, %v1958
      %v2095 = vmul.f32 %v2079, %v1973
      %v2096 = vmul.f32 %v2080, %v1988
      %v2097 = vmul.f32 %v2081, %v2003
      %v2098 = vmul.f32 %v2082, %v2018
      %v2099 = vadd.f32 %v2083, -0.28449672
      %v2100 = vadd.f32 %v2084, -0.28449672
      %v2101 = vadd.f32 %v2085, -0.28449672
      %v2102 = vadd.f32 %v2086, -0.28449672
      %v2103 = vadd.f32 %v2087, -0.28449672
      %v2104 = vadd.f32 %v2088, -0.28449672
      %v2105 = vadd.f32 %v2089, -0.28449672
      %v2106 = vadd.f32 %v2090, -0.28449672
      %v2107 = vadd.f32 %v2091, -0.28449672
      %v2108 = vadd.f32 %v2092, -0.28449672
      %v2109 = vadd.f32 %v2093, -0.28449672
      %v2110 = vadd.f32 %v2094, -0.28449672
      %v2111 = vadd.f32 %v2095, -0.28449672
      %v2112 = vadd.f32 %v2096, -0.28449672
      %v2113 = vadd.f32 %v2097, -0.28449672
      %v2114 = vadd.f32 %v2098, -0.28449672
      %v2115 = vmul.f32 %v2099, %v1793
      %v2116 = vmul.f32 %v2100, %v1808
      %v2117 = vmul.f32 %v2101, %v1823
      %v2118 = vmul.f32 %v2102, %v1838
      %v2119 = vmul.f32 %v2103, %v1853
      %v2120 = vmul.f32 %v2104, %v1868
      %v2121 = vmul.f32 %v2105, %v1883
      %v2122 = vmul.f32 %v2106, %v1898
      %v2123 = vmul.f32 %v2107, %v1913
      %v2124 = vmul.f32 %v2108, %v1928
      %v2125 = vmul.f32 %v2109, %v1943
      %v2126 = vmul.f32 %v2110, %v1958
      %v2127 = vmul.f32 %v2111, %v1973
      %v2128 = vmul.f32 %v2112, %v1988
      %v2129 = vmul.f32 %v2113, %v2003
      %v2130 = vmul.f32 %v2114, %v2018
      %v2131 = vadd.f32 %v2115, 0.2548296
      %v2132 = vadd.f32 %v2116, 0.2548296
      %v2133 = vadd.f32 %v2117, 0.2548296
      %v2134 = vadd.f32 %v2118, 0.2548296
      %v2135 = vadd.f32 %v2119, 0.2548296
      %v2136 = vadd.f32 %v2120, 0.2548296
      %v2137 = vadd.f32 %v2121, 0.2548296
      %v2138 = vadd.f32 %v2122, 0.2548296
      %v2139 = vadd.f32 %v2123, 0.2548296
      %v2140 = vadd.f32 %v2124, 0.2548296
      %v2141 = vadd.f32 %v2125, 0.2548296
      %v2142 = vadd.f32 %v2126, 0.2548296
      %v2143 = vadd.f32 %v2127, 0.2548296
      %v2144 = vadd.f32 %v2128, 0.2548296
      %v2145 = vadd.f32 %v2129, 0.2548296
      %v2146 = vadd.f32 %v2130, 0.2548296
      %v2147 = vmul.f32 %v2131, %v1793
      %v2148 = vmul.f32 %v2132, %v1808
      %v2149 = vmul.f32 %v2133, %v1823
      %v2150 = vmul.f32 %v2134, %v1838
      %v2151 = vmul.f32 %v2135, %v1853
      %v2152 = vmul.f32 %v2136, %v1868
      %v2153 = vmul.f32 %v2137, %v1883
      %v2154 = vmul.f32 %v2138, %v1898
      %v2155 = vmul.f32 %v2139, %v1913
      %v2156 = vmul.f32 %v2140, %v1928
      %v2157 = vmul.f32 %v2141, %v1943
      %v2158 = vmul.f32 %v2142, %v1958
      %v2159 = vmul.f32 %v2143, %v1973
      %v2160 = vmul.f32 %v2144, %v1988
      %v2161 = vmul.f32 %v2145, %v2003
      %v2162 = vmul.f32 %v2146, %v2018
      %v2163 = vsub.f32 0.0, %v1731
      %v2164 = vsub.f32 0.0, %v1732
      %v2165 = vsub.f32 0.0, %v1733
      %v2166 = vsub.f32 0.0, %v1734
      %v2167 = vsub.f32 0.0, %v1735
      %v2168 = vsub.f32 0.0, %v1736
      %v2169 = vsub.f32 0.0, %v1737
      %v2170 = vsub.f32 0.0, %v1738
      %v2171 = vsub.f32 0.0, %v1739
      %v2172 = vsub.f32 0.0, %v1740
      %v2173 = vsub.f32 0.0, %v1741
      %v2174 = vsub.f32 0.0, %v1742
      %v2175 = vsub.f32 0.0, %v1743
      %v2176 = vsub.f32 0.0, %v1744
      %v2177 = vsub.f32 0.0, %v1745
      %v2178 = vsub.f32 0.0, %v1746
      %v2179 = vmul.f32 %v2163, %v1731
      %v2180 = vmul.f32 %v2164, %v1732
      %v2181 = vmul.f32 %v2165, %v1733
      %v2182 = vmul.f32 %v2166, %v1734
      %v2183 = vmul.f32 %v2167, %v1735
      %v2184 = vmul.f32 %v2168, %v1736
      %v2185 = vmul.f32 %v2169, %v1737
      %v2186 = vmul.f32 %v2170, %v1738
      %v2187 = vmul.f32 %v2171, %v1739
      %v2188 = vmul.f32 %v2172, %v1740
      %v2189 = vmul.f32 %v2173, %v1741
      %v2190 = vmul.f32 %v2174, %v1742
      %v2191 = vmul.f32 %v2175, %v1743
      %v2192 = vmul.f32 %v2176, %v1744
      %v2193 = vmul.f32 %v2177, %v1745
      %v2194 = vmul.f32 %v2178, %v1746
      %v2195 = vmul.f32 %v2179, 1.442695
      %v2196 = vpow.pop %v2195
      %v2197 = vmul.f32 %v2180, 1.442695
      %v2198 = vpow.pop %v2197
      %v2199 = vmul.f32 %v2181, 1.442695
      %v2200 = vpow.pop %v2199
      %v2201 = vmul.f32 %v2182, 1.442695
      %v2202 = vpow.pop %v2201
      %v2203 = vmul.f32 %v2183, 1.442695
      %v2204 = vpow.pop %v2203
      %v2205 = vmul.f32 %v2184, 1.442695
      %v2206 = vpow.pop %v2205
      %v2207 = vmul.f32 %v2185, 1.442695
      %v2208 = vpow.pop %v2207
      %v2209 = vmul.f32 %v2186, 1.442695
      %v2210 = vpow.pop %v2209
      %v2211 = vmul.f32 %v2187, 1.442695
      %v2212 = vpow.pop %v2211
      %v2213 = vmul.f32 %v2188, 1.442695
      %v2214 = vpow.pop %v2213
      %v2215 = vmul.f32 %v2189, 1.442695
      %v2216 = vpow.pop %v2215
      %v2217 = vmul.f32 %v2190, 1.442695
      %v2218 = vpow.pop %v2217
      %v2219 = vmul.f32 %v2191, 1.442695
      %v2220 = vpow.pop %v2219
      %v2221 = vmul.f32 %v2192, 1.442695
      %v2222 = vpow.pop %v2221
      %v2223 = vmul.f32 %v2193, 1.442695
      %v2224 = vpow.pop %v2223
      %v2225 = vmul.f32 %v2194, 1.442695
      %v2226 = vpow.pop %v2225
      %v2227 = vmul.f32 %v2147, %v2196
      %v2228 = vmul.f32 %v2148, %v2198
      %v2229 = vmul.f32 %v2149, %v2200
      %v2230 = vmul.f32 %v2150, %v2202
      %v2231 = vmul.f32 %v2151, %v2204
      %v2232 = vmul.f32 %v2152, %v2206
      %v2233 = vmul.f32 %v2153, %v2208
      %v2234 = vmul.f32 %v2154, %v2210
      %v2235 = vmul.f32 %v2155, %v2212
      %v2236 = vmul.f32 %v2156, %v2214
      %v2237 = vmul.f32 %v2157, %v2216
      %v2238 = vmul.f32 %v2158, %v2218
      %v2239 = vmul.f32 %v2159, %v2220
      %v2240 = vmul.f32 %v2160, %v2222
      %v2241 = vmul.f32 %v2161, %v2224
      %v2242 = vmul.f32 %v2162, %v2226
      %v2243 = vsub.f32 1.0, %v2227
      %v2244 = vsub.f32 1.0, %v2228
      %v2245 = vsub.f32 1.0, %v2229
      %v2246 = vsub.f32 1.0, %v2230
      %v2247 = vsub.f32 1.0, %v2231
      %v2248 = vsub.f32 1.0, %v2232
      %v2249 = vsub.f32 1.0, %v2233
      %v2250 = vsub.f32 1.0, %v2234
      %v2251 = vsub.f32 1.0, %v2235
      %v2252 = vsub.f32 1.0, %v2236
      %v2253 = vsub.f32 1.0, %v2237
      %v2254 = vsub.f32 1.0, %v2238
      %v2255 = vsub.f32 1.0, %v2239
      %v2256 = vsub.f32 1.0, %v2240
      %v2257 = vsub.f32 1.0, %v2241
      %v2258 = vsub.f32 1.0, %v2242
      %vm2259 = vcmp.ge.f32.partialorder %v1715, 0.0
      %vm2260 = vcmp.ge.f32.partialorder %v1716, 0.0
      %vm2261 = vcmp.ge.f32.partialorder %v1717, 0.0
      %vm2262 = vcmp.ge.f32.partialorder %v1718, 0.0
      %vm2263 = vcmp.ge.f32.partialorder %v1719, 0.0
      %vm2264 = vcmp.ge.f32.partialorder %v1720, 0.0
      %vm2265 = vcmp.ge.f32.partialorder %v1721, 0.0
      %vm2266 = vcmp.ge.f32.partialorder %v1722, 0.0
      %vm2267 = vcmp.ge.f32.partialorder %v1723, 0.0
      %vm2268 = vcmp.ge.f32.partialorder %v1724, 0.0
      %vm2269 = vcmp.ge.f32.partialorder %v1725, 0.0
      %vm2270 = vcmp.ge.f32.partialorder %v1726, 0.0
      %vm2271 = vcmp.ge.f32.partialorder %v1727, 0.0
      %vm2272 = vcmp.ge.f32.partialorder %v1728, 0.0
      %vm2273 = vcmp.ge.f32.partialorder %v1729, 0.0
      %vm2274 = vcmp.ge.f32.partialorder %v1730, 0.0
      %v2275 = vsub.f32 0.0, %v2243
      %v2276 = vsub.f32 0.0, %v2244
      %v2277 = vsub.f32 0.0, %v2245
      %v2278 = vsub.f32 0.0, %v2246
      %v2279 = vsub.f32 0.0, %v2247
      %v2280 = vsub.f32 0.0, %v2248
      %v2281 = vsub.f32 0.0, %v2249
      %v2282 = vsub.f32 0.0, %v2250
      %v2283 = vsub.f32 0.0, %v2251
      %v2284 = vsub.f32 0.0, %v2252
      %v2285 = vsub.f32 0.0, %v2253
      %v2286 = vsub.f32 0.0, %v2254
      %v2287 = vsub.f32 0.0, %v2255
      %v2288 = vsub.f32 0.0, %v2256
      %v2289 = vsub.f32 0.0, %v2257
      %v2290 = vsub.f32 0.0, %v2258
      %v2291 = vsel %vm2259, %v2243, %v2275
      %v2292 = vsel %vm2260, %v2244, %v2276
      %v2293 = vsel %vm2261, %v2245, %v2277
      %v2294 = vsel %vm2262, %v2246, %v2278
      %v2295 = vsel %vm2263, %v2247, %v2279
      %v2296 = vsel %vm2264, %v2248, %v2280
      %v2297 = vsel %vm2265, %v2249, %v2281
      %v2298 = vsel %vm2266, %v2250, %v2282
      %v2299 = vsel %vm2267, %v2251, %v2283
      %v2300 = vsel %vm2268, %v2252, %v2284
      %v2301 = vsel %vm2269, %v2253, %v2285
      %v2302 = vsel %vm2270, %v2254, %v2286
      %v2303 = vsel %vm2271, %v2255, %v2287
      %v2304 = vsel %vm2272, %v2256, %v2288
      %v2305 = vsel %vm2273, %v2257, %v2289
      %v2306 = vsel %vm2274, %v2258, %v2290
      %v2307 = vadd.f32 %v2291, 1.0
      %v2308 = vadd.f32 %v2292, 1.0
      %v2309 = vadd.f32 %v2293, 1.0
      %v2310 = vadd.f32 %v2294, 1.0
      %v2311 = vadd.f32 %v2295, 1.0
      %v2312 = vadd.f32 %v2296, 1.0
      %v2313 = vadd.f32 %v2297, 1.0
      %v2314 = vadd.f32 %v2298, 1.0
      %v2315 = vadd.f32 %v2299, 1.0
      %v2316 = vadd.f32 %v2300, 1.0
      %v2317 = vadd.f32 %v2301, 1.0
      %v2318 = vadd.f32 %v2302, 1.0
      %v2319 = vadd.f32 %v2303, 1.0
      %v2320 = vadd.f32 %v2304, 1.0
      %v2321 = vadd.f32 %v2305, 1.0
      %v2322 = vadd.f32 %v2306, 1.0
      %v2323 = vmul.f32 %v1699, %v2307
      %v2324 = vmul.f32 %v1700, %v2308
      %v2325 = vmul.f32 %v1701, %v2309
      %v2326 = vmul.f32 %v1702, %v2310
      %v2327 = vmul.f32 %v1703, %v2311
      %v2328 = vmul.f32 %v1704, %v2312
      %v2329 = vmul.f32 %v1705, %v2313
      %v2330 = vmul.f32 %v1706, %v2314
      %v2331 = vmul.f32 %v1707, %v2315
      %v2332 = vmul.f32 %v1708, %v2316
      %v2333 = vmul.f32 %v1709, %v2317
      %v2334 = vmul.f32 %v1710, %v2318
      %v2335 = vmul.f32 %v1711, %v2319
      %v2336 = vmul.f32 %v1712, %v2320
      %v2337 = vmul.f32 %v1713, %v2321
      %v2338 = vmul.f32 %v1714, %v2322
      %v2339 = vpack.c.bf16 %v2324, %v2323
      %v2340 = vpack.c.bf16 %v2326, %v2325
      %v2341 = vpack.c.bf16 %v2328, %v2327
      %v2342 = vpack.c.bf16 %v2330, %v2329
      %v2343 = vpack.c.bf16 %v2332, %v2331
      %v2344 = vpack.c.bf16 %v2334, %v2333
      %v2345 = vpack.c.bf16 %v2336, %v2335
      %v2346 = vpack.c.bf16 %v2338, %v2337
      %v2347 = vld [vmem:[%s4 + $0xa0] sm:$0xf]
      %v2348 = vld [vmem:[%s4 + $0xa4] sm:$0xf]
      %v2349 = vld [vmem:[%s4 + $0xa8] sm:$0xf]
      %v2350 = vld [vmem:[%s4 + $0xac] sm:$0xf]
      %v2351 = vld [vmem:[%s4 + $0xb0] sm:$0xf]
      %v2352 = vld [vmem:[%s4 + $0xb4] sm:$0xf]
      %v2353 = vld [vmem:[%s4 + $0xb8] sm:$0xf]
      %v2354 = vld [vmem:[%s4 + $0xbc] sm:$0xf]
      %v2355 = vld [vmem:[%s4 + $0xc0] sm:$0xf]
      %v2356 = vld [vmem:[%s4 + $0xc4] sm:$0xf]
      %v2357 = vld [vmem:[%s4 + $0xc8] sm:$0xf]
      %v2358 = vld [vmem:[%s4 + $0xcc] sm:$0xf]
      %v2359 = vld [vmem:[%s4 + $0xd0] sm:$0xf]
      %v2360 = vld [vmem:[%s4 + $0xd4] sm:$0xf]
      %v2361 = vld [vmem:[%s4 + $0xd8] sm:$0xf]
      %v2362 = vld [vmem:[%s4 + $0xdc] sm:$0xf]
      %v2363 = vld [vmem:[%s5 + $0x3] sm:$0x1]
      %v2364 = vperm.slane %v2363, 0
      %v2381 = vunpack.c.l.b16 %v2347
      %v2382 = vunpack.c.l.b16 %v2348
      %v2383 = vunpack.c.l.b16 %v2349
      %v2384 = vunpack.c.l.b16 %v2350
      %v2385 = vunpack.c.l.b16 %v2351
      %v2386 = vunpack.c.l.b16 %v2352
      %v2387 = vunpack.c.l.b16 %v2353
      %v2388 = vunpack.c.l.b16 %v2354
      %v2389 = vunpack.c.l.b16 %v2355
      %v2390 = vunpack.c.l.b16 %v2356
      %v2391 = vunpack.c.l.b16 %v2357
      %v2392 = vunpack.c.l.b16 %v2358
      %v2393 = vunpack.c.l.b16 %v2359
      %v2394 = vunpack.c.l.b16 %v2360
      %v2395 = vunpack.c.l.b16 %v2361
      %v2396 = vunpack.c.l.b16 %v2362
      %v2397 = vpack.c.b16 %v2382, %v2381
      %v2398 = vpack.c.b16 %v2384, %v2383
      %v2399 = vpack.c.b16 %v2386, %v2385
      %v2400 = vpack.c.b16 %v2388, %v2387
      %v2401 = vpack.c.b16 %v2390, %v2389
      %v2402 = vpack.c.b16 %v2392, %v2391
      %v2403 = vpack.c.b16 %v2394, %v2393
      %v2404 = vpack.c.b16 %v2396, %v2395
      %2413 = vmatpush.bf16.msra.mxu0 %v2404
      %2414 = vmatpush.bf16.msra.mxu0 %v2403
      %2415 = vmatpush.bf16.msra.mxu0 %v2402
      %2416 = vmatpush.bf16.msra.mxu0 %v2401
      %2417 = vmatpush.bf16.msra.mxu0 %v2400
      %2418 = vmatpush.bf16.msra.mxu0 %v2399
      %2419 = vmatpush.bf16.msra.mxu0 %v2398
      %2420 = vmatpush.bf16.msra.mxu0 %v2397
      %2421 = vmatmul.bf16.gmra.mxu0 %v2339
      %v2422 = vpop.f32.mrf.mxu0
      %v2423 = vadd.f32 %v2364, %v2422
      %v2424 = vpop.f32.mrf.mxu0
      %v2425 = vadd.f32 %v2364, %v2424
      %2426 = vmatmul.bf16.gmra.mxu0 %v2340
      %v2427 = vpop.f32.mrf.mxu0
      %v2428 = vadd.f32 %v2364, %v2427
      %v2429 = vpop.f32.mrf.mxu0
      %v2430 = vadd.f32 %v2364, %v2429
      %2431 = vmatmul.bf16.gmra.mxu0 %v2341
      %v2432 = vpop.f32.mrf.mxu0
      %v2433 = vadd.f32 %v2364, %v2432
      %v2434 = vpop.f32.mrf.mxu0
      %v2435 = vadd.f32 %v2364, %v2434
      %2436 = vmatmul.bf16.gmra.mxu0 %v2342
      %v2437 = vpop.f32.mrf.mxu0
      %v2438 = vadd.f32 %v2364, %v2437
      %v2439 = vpop.f32.mrf.mxu0
      %v2440 = vadd.f32 %v2364, %v2439
      %2441 = vmatmul.bf16.gmra.mxu0 %v2343
      %v2442 = vpop.f32.mrf.mxu0
      %v2443 = vadd.f32 %v2364, %v2442
      %v2444 = vpop.f32.mrf.mxu0
      %v2445 = vadd.f32 %v2364, %v2444
      %2446 = vmatmul.bf16.gmra.mxu0 %v2344
      %v2447 = vpop.f32.mrf.mxu0
      %v2448 = vadd.f32 %v2364, %v2447
      %v2449 = vpop.f32.mrf.mxu0
      %v2450 = vadd.f32 %v2364, %v2449
      %2451 = vmatmul.bf16.gmra.mxu0 %v2345
      %v2452 = vpop.f32.mrf.mxu0
      %v2453 = vadd.f32 %v2364, %v2452
      %v2454 = vpop.f32.mrf.mxu0
      %v2455 = vadd.f32 %v2364, %v2454
      %2456 = vmatmul.bf16.gmra.mxu0 %v2346
      %v2457 = vpop.f32.mrf.mxu0
      %v2458 = vadd.f32 %v2364, %v2457
      %v2459 = vpop.f32.mrf.mxu0
      %v2460 = vadd.f32 %v2364, %v2459
      %2461 = vdwg.mxu0
      %v2462 = vld [vmem:[#allocation4] sm:$0xff]
      %v2463 = vld [vmem:[#allocation4 + $0x8] sm:$0xff]
      %v2464 = vld [vmem:[#allocation4 + $0x10] sm:$0xff]
      %v2465 = vld [vmem:[#allocation4 + $0x18] sm:$0xff]
      %v2466 = vld [vmem:[#allocation4 + $0x20] sm:$0xff]
      %v2467 = vld [vmem:[#allocation4 + $0x28] sm:$0xff]
      %v2468 = vld [vmem:[#allocation4 + $0x30] sm:$0xff]
      %v2469 = vld [vmem:[#allocation4 + $0x38] sm:$0xff]
      %v2470 = vpack.c.bf16 %v2425, %v2423
      %v2471 = vpack.c.bf16 %v2430, %v2428
      %v2472 = vpack.c.bf16 %v2435, %v2433
      %v2473 = vpack.c.bf16 %v2440, %v2438
      %v2474 = vpack.c.bf16 %v2445, %v2443
      %v2475 = vpack.c.bf16 %v2450, %v2448
      %v2476 = vpack.c.bf16 %v2455, %v2453
      %v2477 = vpack.c.bf16 %v2460, %v2458
      %2478 = vmatpush.bf16.msra.mxu0 %v2477
      %2479 = vmatpush.bf16.msra.mxu0 %v2476
      %2480 = vmatpush.bf16.msra.mxu0 %v2475
      %2481 = vmatpush.bf16.msra.mxu0 %v2474
      %2482 = vmatpush.bf16.msra.mxu0 %v2473
      %2483 = vmatpush.bf16.msra.mxu0 %v2472
      %2484 = vmatpush.bf16.msra.mxu0 %v2471
      %2485 = vmatpush.bf16.msra.mxu0 %v2470
      %2486 = vmatmul.bf16.gmra.mxu0 %v533
      %v2487 = vpop.f32.mrf.mxu0
      %v2488 = vadd.f32 0.0, %v2487
      %v2489 = vpop.f32.mrf.mxu0
      %v2490 = vadd.f32 0.0, %v2489
      %2491 = vmatmul.bf16.gmra.mxu0 %v534
      %v2492 = vpop.f32.mrf.mxu0
      %v2493 = vadd.f32 0.0, %v2492
      %v2494 = vpop.f32.mrf.mxu0
      %v2495 = vadd.f32 0.0, %v2494
      %2496 = vmatmul.bf16.gmra.mxu0 %v535
      %v2497 = vpop.f32.mrf.mxu0
      %v2498 = vadd.f32 0.0, %v2497
      %v2499 = vpop.f32.mrf.mxu0
      %v2500 = vadd.f32 0.0, %v2499
      %2501 = vmatmul.bf16.gmra.mxu0 %v536
      %v2502 = vpop.f32.mrf.mxu0
      %v2503 = vadd.f32 0.0, %v2502
      %v2504 = vpop.f32.mrf.mxu0
      %v2505 = vadd.f32 0.0, %v2504
      %2506 = vdwg.mxu0
      %v2507 = vadd.f32 %v2462, %v2488
      %v2508 = vadd.f32 %v2463, %v2490
      %v2509 = vadd.f32 %v2464, %v2493
      %v2510 = vadd.f32 %v2465, %v2495
      %v2511 = vadd.f32 %v2466, %v2498
      %v2512 = vadd.f32 %v2467, %v2500
      %v2513 = vadd.f32 %v2468, %v2503
      %v2514 = vadd.f32 %v2469, %v2505
      %2515 = vst [vmem:[#allocation4] sm:$0xff] %v2507
      %2516 = vst [vmem:[#allocation4 + $0x8] sm:$0xff] %v2508
      %2517 = vst [vmem:[#allocation4 + $0x10] sm:$0xff] %v2509
      %2518 = vst [vmem:[#allocation4 + $0x18] sm:$0xff] %v2510
      %2519 = vst [vmem:[#allocation4 + $0x20] sm:$0xff] %v2511
      %2520 = vst [vmem:[#allocation4 + $0x28] sm:$0xff] %v2512
      %2521 = vst [vmem:[#allocation4 + $0x30] sm:$0xff] %v2513
      %2522 = vst [vmem:[#allocation4 + $0x38] sm:$0xff] %v2514
      %p2523 = scmp.eq.s32.totalorder %s17, 2
      // Predicated region
      $region49: #{schnet_interaction.1} parent=43 // pred_check
        %p2524 = pneg %p2523
      $region50: #{schnet_interaction.1} parent=43 // pred_check_branch
        %2526 = sbr.rel (%p2524) target = $region52
      $region51: #{schnet_interaction.1} parent=43 // pred_region
        %v2527 = vld [vmem:[#allocation2] sm:$0xff]
        %v2528 = vld [vmem:[#allocation2 + $0x8] sm:$0xff]
        %v2529 = vld [vmem:[#allocation2 + $0x10] sm:$0xff]
        %v2530 = vld [vmem:[#allocation2 + $0x18] sm:$0xff]
        %v2531 = vld [vmem:[#allocation2 + $0x20] sm:$0xff]
        %v2532 = vld [vmem:[#allocation2 + $0x28] sm:$0xff]
        %v2533 = vld [vmem:[#allocation2 + $0x30] sm:$0xff]
        %v2534 = vld [vmem:[#allocation2 + $0x38] sm:$0xff]
        %v2535 = vld [vmem:[#allocation4] sm:$0xff]
        %v2536 = vld [vmem:[#allocation4 + $0x8] sm:$0xff]
        %v2537 = vld [vmem:[#allocation4 + $0x10] sm:$0xff]
        %v2538 = vld [vmem:[#allocation4 + $0x18] sm:$0xff]
        %v2539 = vld [vmem:[#allocation4 + $0x20] sm:$0xff]
        %v2540 = vld [vmem:[#allocation4 + $0x28] sm:$0xff]
        %v2541 = vld [vmem:[#allocation4 + $0x30] sm:$0xff]
        %v2542 = vld [vmem:[#allocation4 + $0x38] sm:$0xff]
        %v2543 = vadd.f32 %v2527, %v2535
        %v2544 = vadd.f32 %v2528, %v2536
        %v2545 = vadd.f32 %v2529, %v2537
        %v2546 = vadd.f32 %v2530, %v2538
        %v2547 = vadd.f32 %v2531, %v2539
        %v2548 = vadd.f32 %v2532, %v2540
        %v2549 = vadd.f32 %v2533, %v2541
        %v2550 = vadd.f32 %v2534, %v2542
        %v2551 = vpack.c.bf16 %v2544, %v2543
        %v2552 = vpack.c.bf16 %v2546, %v2545
        %v2553 = vpack.c.bf16 %v2548, %v2547
        %v2554 = vpack.c.bf16 %v2550, %v2549
        %v2555 = vld [vmem:[%s4 + $0xe0] sm:$0xf]
        %v2556 = vld [vmem:[%s4 + $0xe4] sm:$0xf]
        %v2557 = vld [vmem:[%s4 + $0xe8] sm:$0xf]
        %v2558 = vld [vmem:[%s4 + $0xec] sm:$0xf]
        %v2559 = vld [vmem:[%s4 + $0xf0] sm:$0xf]
        %v2560 = vld [vmem:[%s4 + $0xf4] sm:$0xf]
        %v2561 = vld [vmem:[%s4 + $0xf8] sm:$0xf]
        %v2562 = vld [vmem:[%s4 + $0xfc] sm:$0xf]
        %v2563 = vld [vmem:[%s4 + $0x100] sm:$0xf]
        %v2564 = vld [vmem:[%s4 + $0x104] sm:$0xf]
        %v2565 = vld [vmem:[%s4 + $0x108] sm:$0xf]
        %v2566 = vld [vmem:[%s4 + $0x10c] sm:$0xf]
        %v2567 = vld [vmem:[%s4 + $0x110] sm:$0xf]
        %v2568 = vld [vmem:[%s4 + $0x114] sm:$0xf]
        %v2569 = vld [vmem:[%s4 + $0x118] sm:$0xf]
        %v2570 = vld [vmem:[%s4 + $0x11c] sm:$0xf]
        %v2571 = vld [vmem:[%s5 + $0x4] sm:$0x1]
        %v2572 = vperm.slane %v2571, 0
        %v2589 = vunpack.c.l.b16 %v2555
        %v2590 = vunpack.c.l.b16 %v2556
        %v2591 = vunpack.c.l.b16 %v2557
        %v2592 = vunpack.c.l.b16 %v2558
        %v2593 = vunpack.c.l.b16 %v2559
        %v2594 = vunpack.c.l.b16 %v2560
        %v2595 = vunpack.c.l.b16 %v2561
        %v2596 = vunpack.c.l.b16 %v2562
        %v2597 = vunpack.c.l.b16 %v2563
        %v2598 = vunpack.c.l.b16 %v2564
        %v2599 = vunpack.c.l.b16 %v2565
        %v2600 = vunpack.c.l.b16 %v2566
        %v2601 = vunpack.c.l.b16 %v2567
        %v2602 = vunpack.c.l.b16 %v2568
        %v2603 = vunpack.c.l.b16 %v2569
        %v2604 = vunpack.c.l.b16 %v2570
        %v2605 = vpack.c.b16 %v2590, %v2589
        %v2606 = vpack.c.b16 %v2592, %v2591
        %v2607 = vpack.c.b16 %v2594, %v2593
        %v2608 = vpack.c.b16 %v2596, %v2595
        %v2609 = vpack.c.b16 %v2598, %v2597
        %v2610 = vpack.c.b16 %v2600, %v2599
        %v2611 = vpack.c.b16 %v2602, %v2601
        %v2612 = vpack.c.b16 %v2604, %v2603
        %2621 = vmatpush.bf16.msra.mxu0 %v2612
        %2622 = vmatpush.bf16.msra.mxu0 %v2611
        %2623 = vmatpush.bf16.msra.mxu0 %v2610
        %2624 = vmatpush.bf16.msra.mxu0 %v2609
        %2625 = vmatpush.bf16.msra.mxu0 %v2608
        %2626 = vmatpush.bf16.msra.mxu0 %v2607
        %2627 = vmatpush.bf16.msra.mxu0 %v2606
        %2628 = vmatpush.bf16.msra.mxu0 %v2605
        %2629 = vmatmul.bf16.gmra.mxu0 %v2551
        %v2630 = vpop.f32.mrf.mxu0
        %v2631 = vadd.f32 %v2572, %v2630
        %v2632 = vpop.f32.mrf.mxu0
        %v2633 = vadd.f32 %v2572, %v2632
        %2634 = vmatmul.bf16.gmra.mxu0 %v2552
        %v2635 = vpop.f32.mrf.mxu0
        %v2636 = vadd.f32 %v2572, %v2635
        %v2637 = vpop.f32.mrf.mxu0
        %v2638 = vadd.f32 %v2572, %v2637
        %2639 = vmatmul.bf16.gmra.mxu0 %v2553
        %v2640 = vpop.f32.mrf.mxu0
        %v2641 = vadd.f32 %v2572, %v2640
        %v2642 = vpop.f32.mrf.mxu0
        %v2643 = vadd.f32 %v2572, %v2642
        %2644 = vmatmul.bf16.gmra.mxu0 %v2554
        %v2645 = vpop.f32.mrf.mxu0
        %v2646 = vadd.f32 %v2572, %v2645
        %v2647 = vpop.f32.mrf.mxu0
        %v2648 = vadd.f32 %v2572, %v2647
        %2649 = vdwg.mxu0
        %v2650 = vmax.f32 %v2631, 0.0
        %v2651 = vmax.f32 %v2633, 0.0
        %v2652 = vmax.f32 %v2636, 0.0
        %v2653 = vmax.f32 %v2638, 0.0
        %v2654 = vmax.f32 %v2641, 0.0
        %v2655 = vmax.f32 %v2643, 0.0
        %v2656 = vmax.f32 %v2646, 0.0
        %v2657 = vmax.f32 %v2648, 0.0
        %v2658 = vpack.c.bf16 %v2651, %v2650
        %v2659 = vpack.c.bf16 %v2653, %v2652
        %v2660 = vpack.c.bf16 %v2655, %v2654
        %v2661 = vpack.c.bf16 %v2657, %v2656
        %v2662 = vld [vmem:[%s4 + $0x120] sm:$0xf]
        %v2663 = vld [vmem:[%s4 + $0x124] sm:$0xf]
        %v2664 = vld [vmem:[%s4 + $0x128] sm:$0xf]
        %v2665 = vld [vmem:[%s4 + $0x12c] sm:$0xf]
        %v2666 = vld [vmem:[%s4 + $0x130] sm:$0xf]
        %v2667 = vld [vmem:[%s4 + $0x134] sm:$0xf]
        %v2668 = vld [vmem:[%s4 + $0x138] sm:$0xf]
        %v2669 = vld [vmem:[%s4 + $0x13c] sm:$0xf]
        %v2670 = vld [vmem:[%s4 + $0x140] sm:$0xf]
        %v2671 = vld [vmem:[%s4 + $0x144] sm:$0xf]
        %v2672 = vld [vmem:[%s4 + $0x148] sm:$0xf]
        %v2673 = vld [vmem:[%s4 + $0x14c] sm:$0xf]
        %v2674 = vld [vmem:[%s4 + $0x150] sm:$0xf]
        %v2675 = vld [vmem:[%s4 + $0x154] sm:$0xf]
        %v2676 = vld [vmem:[%s4 + $0x158] sm:$0xf]
        %v2677 = vld [vmem:[%s4 + $0x15c] sm:$0xf]
        %v2678 = vld [vmem:[%s5 + $0x5] sm:$0x1]
        %v2679 = vperm.slane %v2678, 0
        %v2696 = vunpack.c.l.b16 %v2662
        %v2697 = vunpack.c.l.b16 %v2663
        %v2698 = vunpack.c.l.b16 %v2664
        %v2699 = vunpack.c.l.b16 %v2665
        %v2700 = vunpack.c.l.b16 %v2666
        %v2701 = vunpack.c.l.b16 %v2667
        %v2702 = vunpack.c.l.b16 %v2668
        %v2703 = vunpack.c.l.b16 %v2669
        %v2704 = vunpack.c.l.b16 %v2670
        %v2705 = vunpack.c.l.b16 %v2671
        %v2706 = vunpack.c.l.b16 %v2672
        %v2707 = vunpack.c.l.b16 %v2673
        %v2708 = vunpack.c.l.b16 %v2674
        %v2709 = vunpack.c.l.b16 %v2675
        %v2710 = vunpack.c.l.b16 %v2676
        %v2711 = vunpack.c.l.b16 %v2677
        %v2712 = vpack.c.b16 %v2697, %v2696
        %v2713 = vpack.c.b16 %v2699, %v2698
        %v2714 = vpack.c.b16 %v2701, %v2700
        %v2715 = vpack.c.b16 %v2703, %v2702
        %v2716 = vpack.c.b16 %v2705, %v2704
        %v2717 = vpack.c.b16 %v2707, %v2706
        %v2718 = vpack.c.b16 %v2709, %v2708
        %v2719 = vpack.c.b16 %v2711, %v2710
        %2728 = vmatpush.bf16.msra.mxu0 %v2719
        %2729 = vmatpush.bf16.msra.mxu0 %v2718
        %2730 = vmatpush.bf16.msra.mxu0 %v2717
        %2731 = vmatpush.bf16.msra.mxu0 %v2716
        %2732 = vmatpush.bf16.msra.mxu0 %v2715
        %2733 = vmatpush.bf16.msra.mxu0 %v2714
        %2734 = vmatpush.bf16.msra.mxu0 %v2713
        %2735 = vmatpush.bf16.msra.mxu0 %v2712
        %2736 = vmatmul.bf16.gmra.mxu0 %v2658
        %v2737 = vpop.f32.mrf.mxu0
        %v2738 = vadd.f32 %v2679, %v2737
        %v2739 = vpop.f32.mrf.mxu0
        %v2740 = vadd.f32 %v2679, %v2739
        %2741 = vmatmul.bf16.gmra.mxu0 %v2659
        %v2742 = vpop.f32.mrf.mxu0
        %v2743 = vadd.f32 %v2679, %v2742
        %v2744 = vpop.f32.mrf.mxu0
        %v2745 = vadd.f32 %v2679, %v2744
        %2746 = vmatmul.bf16.gmra.mxu0 %v2660
        %v2747 = vpop.f32.mrf.mxu0
        %v2748 = vadd.f32 %v2679, %v2747
        %v2749 = vpop.f32.mrf.mxu0
        %v2750 = vadd.f32 %v2679, %v2749
        %2751 = vmatmul.bf16.gmra.mxu0 %v2661
        %v2752 = vpop.f32.mrf.mxu0
        %v2753 = vadd.f32 %v2679, %v2752
        %v2754 = vpop.f32.mrf.mxu0
        %v2755 = vadd.f32 %v2679, %v2754
        %2756 = vdwg.mxu0
        %2757 = vst [vmem:[%s6] sm:$0xff] %v2738
        %2758 = vst [vmem:[%s6 + $0x8] sm:$0xff] %v2740
        %2759 = vst [vmem:[%s6 + $0x10] sm:$0xff] %v2743
        %2760 = vst [vmem:[%s6 + $0x18] sm:$0xff] %v2745
        %2761 = vst [vmem:[%s6 + $0x20] sm:$0xff] %v2748
        %2762 = vst [vmem:[%s6 + $0x28] sm:$0xff] %v2750
        %2763 = vst [vmem:[%s6 + $0x30] sm:$0xff] %v2753
        %2764 = vst [vmem:[%s6 + $0x38] sm:$0xff] %v2755
      $region52: #{schnet_interaction.1} parent=43 // pred_fallthru
        _
      // Predicated region
      $region53: #{schnet_interaction.1} parent=43 // pred_check
        %p2765 = pneg %p171
      $region54: #{schnet_interaction.1} parent=43 // pred_check_branch
        %2767 = sbr.rel (%p2765) target = $region56
      $region55: #{schnet_interaction.1} parent=43 // pred_region
        _
      $region56: #{schnet_interaction.1} parent=43 // pred_fallthru
        _
      // Predicated region
      $region57: #{schnet_interaction.1} parent=43 // pred_check
        %p2768 = pneg %p171
      $region58: #{schnet_interaction.1} parent=43 // pred_check_branch
        %2770 = sbr.rel (%p2768) target = $region60
      $region59: #{schnet_interaction.1} parent=43 // pred_region
        _
      $region60: #{schnet_interaction.1} parent=43 // pred_fallthru
        _
    $region44: #{schnet_interaction.1} parent=5 // pred_fallthru
      _
    %p2771 = scmp.le.s32.totalorder 2, %s12
    // Predicated region
    $region61: #{schnet_interaction.1} parent=5 // pred_check
      %p2772 = pneg %p2771
    $region62: #{schnet_interaction.1} parent=5 // pred_check_branch
      %2774 = sbr.rel (%p2772) target = $region64
    $region63: #{schnet_interaction.1} parent=5 // pred_region
      %s2775 = ssub.s32 %s12, 2
    $region64: #{schnet_interaction.1} parent=5 // pred_fallthru
      _
  $region6: #{schnet_interaction.1} parent=0 // loop_footer
    %s16 = sadd.s32 1, %s12
  $region7: #{schnet_interaction.1} parent=0 // loop_footer_branch
    %11 = sbr.rel target = $region3
  $region8: #{schnet_interaction.1} parent=0 // loop_exit
    _

</llo_original>
